<compile_context>
chip_gen: v6e
topology: v6e:2x2x1
jax: 0.10.0
libtpu: 0.0.40
codegen_flags: <defaults>
</compile_context>

<pallas_src>
import functools
import math

import jax
import jax.numpy as jnp
from jax import lax
from jax.experimental import pallas as pl
from jax.experimental.pallas import tpu as pltpu


# -----------------------------------------------------------------------------
# helpers
# -----------------------------------------------------------------------------
def _rmsnorm(v, gain, eps=1e-6):
    ms = jnp.mean(v * v, axis=-1, keepdims=True)
    return v * lax.rsqrt(ms + eps) * gain


# contract the LAST dim of both operands: q (T, h) x k (T, h) -> (T, T)
# (feeds the MXU without an explicit k.T / XLU transpose)
_DN_LAST = (((1,), (1,)), ((), ()))


def _vmem_limit(block_bytes):
    # double-buffered blocks + headroom, capped below v7x physical VMEM (64 MiB)
    return int(min(56 * 1024 * 1024,
                   max(32 * 1024 * 1024, 2 * block_bytes + (2 << 20))))


# -----------------------------------------------------------------------------
# Pallas kernel: one transformer block (per batch element)
# -----------------------------------------------------------------------------
def _block_kernel(x_ref, g1_ref, wq_ref, wk_ref, wv_ref, wo_ref,
                  cos_ref, sin_ref,
                  g2_ref, w1_ref, b1_ref, w3_ref, b3_ref, w2_ref, b2_ref,
                  y_ref, attn_sc, *, num_heads, head_dim):
    x = x_ref[0]                       # (T, D) f32
    T = x.shape[0]
    half = head_dim // 2
    scale = 1.0 / math.sqrt(head_dim)

    # --- pre-attention RMSNorm (f32 math), single bf16 cast for the MXU ------
    h = _rmsnorm(x, g1_ref[0]).astype(jnp.bfloat16)

    # --- full-width QKV projections (N = D fills the MXU) ---------------------
    # fold the 1/sqrt(head_dim) score scale into q once (RoPE is linear).
    q_full = jnp.dot(h, wq_ref[...], preferred_element_type=jnp.float32) * scale
    k_full = jnp.dot(h, wk_ref[...], preferred_element_type=jnp.float32)
    v_full = jnp.dot(h, wv_ref[...], preferred_element_type=jnp.float32)

    cos = cos_ref[...]                 # (T, head_dim//2) f32
    sin = sin_ref[...]

    row = lax.broadcasted_iota(jnp.int32, (T, T), 0)
    col = lax.broadcasted_iota(jnp.int32, (T, T), 1)
    causal = col <= row                # causal attention mask

    # TODO(synk): for long T, tile this loop flash-style over q/kv blocks so
    # the (T, T) scores never fully materialize (mandatory on v7x 64 MiB VMEM).
    for hidx in range(num_heads):      # static loop over heads
        s0 = hidx * head_dim
        q = q_full[:, s0:s0 + head_dim]
        k = k_full[:, s0:s0 + head_dim]
        v = v_full[:, s0:s0 + head_dim]

        # RoPE (half-split convention).  Scores only need the rotated q/k, and
        # q_rot @ k_rot^T decomposes into the two halves -> no concatenation.
        q1, q2 = q[:, :half], q[:, half:]
        k1, k2 = k[:, :half], k[:, half:]
        qr1 = (q1 * cos - q2 * sin).astype(jnp.bfloat16)
        qr2 = (q1 * sin + q2 * cos).astype(jnp.bfloat16)
        kr1 = (k1 * cos - k2 * sin).astype(jnp.bfloat16)
        kr2 = (k1 * sin + k2 * cos).astype(jnp.bfloat16)

        scores = (lax.dot_general(qr1, kr1, _DN_LAST,
                                  preferred_element_type=jnp.float32) +
                  lax.dot_general(qr2, kr2, _DN_LAST,
                                  preferred_element_type=jnp.float32))
        scores = jnp.where(causal, scores, -1e30)

        m = jnp.max(scores, axis=-1, keepdims=True)
        p = jnp.exp(scores - m)
        # EUP reciprocal instead of a VALU divide
        p = p * pl.reciprocal(jnp.sum(p, axis=-1, keepdims=True), approx=True)

        o = jnp.dot(p.astype(jnp.bfloat16), v.astype(jnp.bfloat16),
                    preferred_element_type=jnp.float32)       # (T, Dh)
        attn_sc[:, s0:s0 + head_dim] = o                      # stage per head

    # single full-width output projection instead of num_heads skinny matmuls
    attn_out = jnp.dot(attn_sc[...].astype(jnp.bfloat16), wo_ref[...],
                       preferred_element_type=jnp.float32)
    x = x + attn_out                   # residual 1

    # --- pre-FFN RMSNorm + SwiGLU ---------------------------------------------
    h2 = _rmsnorm(x, g2_ref[0]).astype(jnp.bfloat16)
    gate = jnp.dot(h2, w1_ref[...], preferred_element_type=jnp.float32) + b1_ref[0]
    up = jnp.dot(h2, w3_ref[...], preferred_element_type=jnp.float32) + b3_ref[0]
    silu = gate * (1.0 / (1.0 + jnp.exp(-gate)))
    ffn = jnp.dot((silu * up).astype(jnp.bfloat16), w2_ref[...],
                  preferred_element_type=jnp.float32) + b2_ref[0]
    # TODO(synk): emb_dropout / ffd_dropout are identity here (eval mode / p=0.0).

    y_ref[0] = x + ffn                 # residual 2


# -----------------------------------------------------------------------------
# Pallas kernel: final RMSNorm + vocab-tiled projection head
# -----------------------------------------------------------------------------
def _head_kernel(x_ref, g_ref, w_ref, b_ref, out_ref):
    x = x_ref[0]                       # (T, D) f32
    h = _rmsnorm(x, g_ref[0]).astype(jnp.bfloat16)
    out_ref[0] = (jnp.dot(h, w_ref[...], preferred_element_type=jnp.float32)
                  + b_ref[0])


# -----------------------------------------------------------------------------
# wrappers
# -----------------------------------------------------------------------------
def _const_spec(shape):
    # Blocks whose index is constant across the grid (weights, RoPE tables).
    # Pallas only re-fetches on block-index change, so these are DMA'd once.
    # TODO(synk): single-buffer (pl.Buffered(1)) / stream weight tiles for
    # large D so per-layer residency stays within v7x's 64 MiB VMEM.
    return pl.BlockSpec(shape, lambda *_: (0,) * len(shape))


def transformer_block(x, params, cos, sin, *, num_heads):
    B, T, D = x.shape
    H = params["w1"].shape[1]
    Dh = D // num_heads
    kernel = functools.partial(_block_kernel, num_heads=num_heads, head_dim=Dh)

    operands = (x, params["g_attn"], params["wq"], params["wk"], params["wv"],
                params["wo"], cos, sin, params["g_ffn"], params["w1"],
                params["b1"], params["w3"], params["b3"], params["w2"],
                params["b2"])
    # per-step residency: all weight/table blocks + one (1,T,D) in + out block
    block_bytes = (sum(int(a.nbytes) for a in operands[1:])
                   + 2 * (T * D * 4) + T * D * 4)

    return pl.pallas_call(
        kernel,
        out_shape=jax.ShapeDtypeStruct((B, T, D), jnp.float32),
        grid=(B,),
        in_specs=[
            pl.BlockSpec((1, T, D), lambda b: (b, 0, 0)),     # x
            _const_spec((1, D)),                              # attn norm gain
            _const_spec((D, D)),                              # wq (bf16)
            _const_spec((D, D)),                              # wk (bf16)
            _const_spec((D, D)),                              # wv (bf16)
            _const_spec((D, D)),                              # wo (bf16)
            _const_spec((T, Dh // 2)),                        # rope cos
            _const_spec((T, Dh // 2)),                        # rope sin
            _const_spec((1, D)),                              # ffn norm gain
            _const_spec((D, H)),                              # w1 gate (bf16)
            _const_spec((1, H)),                              # b1
            _const_spec((D, H)),                              # w3 up (bf16)
            _const_spec((1, H)),                              # b3
            _const_spec((H, D)),                              # w2 down (bf16)
            _const_spec((1, D)),                              # b2
        ],
        out_specs=pl.BlockSpec((1, T, D), lambda b: (b, 0, 0)),
        scratch_shapes=[pltpu.VMEM((T, D), jnp.float32)],     # per-head attn out
        compiler_params=pltpu.CompilerParams(
            dimension_semantics=("parallel",),
            vmem_limit_bytes=_vmem_limit(block_bytes)),
    )(*operands)


def _pick_vocab_tile(V):
    if V <= 2048:
        return V                         # small vocab: single lane-dense block
    for tn in (2048, 1024, 512, 256, 128):
        if V % tn == 0:
            return tn
    return V                             # fallback: full width


def projection_head(x, g, w, b):
    B, T, D = x.shape
    V = w.shape[1]
    TN = _pick_vocab_tile(V)
    nvt = V // TN

    block_bytes = (T * D * 4 + g.nbytes
                   + D * TN * w.dtype.itemsize
                   + TN * b.dtype.itemsize
                   + T * TN * 4)

    return pl.pallas_call(
        _head_kernel,
        out_shape=jax.ShapeDtypeStruct((B, T, V), jnp.float32),
        grid=(B, nvt),
        in_specs=[
            pl.BlockSpec((1, T, D), lambda b, j: (b, 0, 0)),  # x
            pl.BlockSpec((1, D), lambda b, j: (0, 0)),        # final norm gain
            pl.BlockSpec((D, TN), lambda b, j: (0, j)),       # w_proj tile (bf16)
            pl.BlockSpec((1, TN), lambda b, j: (0, j)),       # b_proj tile
        ],
        out_specs=pl.BlockSpec((1, T, TN), lambda b, j: (b, 0, j)),
        compiler_params=pltpu.CompilerParams(
            dimension_semantics=("parallel", "parallel"),
            vmem_limit_bytes=_vmem_limit(block_bytes)),
    )(x, g, w, b)


def llm_forward(tokens, params, *, num_heads):
    """tokens: (B, T) int32 -> logits (B, T, vocab) f32."""
    emb = params["tok_emb"]                       # (vocab, D) f32
    x = jnp.take(emb, tokens, axis=0)             # embedding lookup (glue)
    # emb_dropout: identity in eval mode / p=0.0
    D = x.shape[-1]
    T = x.shape[1]
    Dh = D // num_heads

    # precompute RoPE tables (glue)
    half = Dh // 2
    inv_freq = 1.0 / (10000.0 ** (jnp.arange(half, dtype=jnp.float32) / half))
    pos = jnp.arange(T, dtype=jnp.float32)
    ang = pos[:, None] * inv_freq[None, :]        # (T, half)
    cos, sin = jnp.cos(ang), jnp.sin(ang)

    for layer_params in params["layers"]:
        x = transformer_block(x, layer_params, cos, sin, num_heads=num_heads)

    return projection_head(x, params["g_final"], params["w_proj"], params["b_proj"])


# -----------------------------------------------------------------------------
# deterministic parameter init (matmul weights stored in bf16)
# -----------------------------------------------------------------------------
def init_params(key, *, vocab_size, dim_emb, num_layers, ffd_hidden):
    def nrm(k, shape, scale=0.02, dtype=jnp.bfloat16):
        return (scale * jax.random.normal(k, shape)).astype(dtype)

    keys = jax.random.split(key, 2 + num_layers)
    params = {
        "tok_emb": nrm(keys[0], (vocab_size, dim_emb), dtype=jnp.float32),
        "g_final": jnp.ones((1, dim_emb), jnp.float32),
        "w_proj": nrm(keys[1], (dim_emb, vocab_size)),
        "b_proj": jnp.zeros((1, vocab_size), jnp.float32),
        "layers": [],
    }
    for li in range(num_layers):
        lk = jax.random.split(keys[2 + li], 8)
        params["layers"].append({
            "g_attn": jnp.ones((1, dim_emb), jnp.float32),
            "wq": nrm(lk[0], (dim_emb, dim_emb)),
            "wk": nrm(lk[1], (dim_emb, dim_emb)),
            "wv": nrm(lk[2], (dim_emb, dim_emb)),
            "wo": nrm(lk[3], (dim_emb, dim_emb)),
            "g_ffn": jnp.ones((1, dim_emb), jnp.float32),
            "w1": nrm(lk[4], (dim_emb, ffd_hidden)),
            "b1": jnp.zeros((1, ffd_hidden), jnp.float32),
            "w3": nrm(lk[5], (dim_emb, ffd_hidden)),
            "b3": jnp.zeros((1, ffd_hidden), jnp.float32),
            "w2": nrm(lk[6], (ffd_hidden, dim_emb)),
            "b2": jnp.zeros((1, dim_emb), jnp.float32),
        })
    return params


# -----------------------------------------------------------------------------
if __name__ == "__main__":
    vocab_size = 64
    context_size = 16
    dim_emb = 32
    num_layers = 2
    attn_num_heads = 4
    ffd_hidden = 4 * dim_emb
    B, T = 2, 8

    key = jax.random.PRNGKey(0)
    k_params, k_tok = jax.random.split(key)
    params = init_params(k_params, vocab_size=vocab_size, dim_emb=dim_emb,
                         num_layers=num_layers, ffd_hidden=ffd_hidden)
    tokens = jax.random.randint(k_tok, (B, T), 0, vocab_size, dtype=jnp.int32)

    logits = jax.jit(functools.partial(llm_forward, num_heads=attn_num_heads))(
        tokens, params)
    logits = jax.block_until_ready(logits)

    assert logits.shape == (B, T, vocab_size), logits.shape
    assert jnp.all(jnp.isfinite(logits))
    print("KERNEL_OK")
</pallas_src>

<mosaic_0001>
module attributes {stable_mosaic.version = 11 : i64} {
  func.func @_head_kernel(%arg0: i32, %arg1: i32, %arg2: memref<1x8x32xf32, #tpu.memory_space<vmem>>, %arg3: memref<1x32xf32, #tpu.memory_space<vmem>>, %arg4: memref<32x64xbf16, #tpu.memory_space<vmem>>, %arg5: memref<1x64xf32, #tpu.memory_space<vmem>>, %arg6: memref<1x8x64xf32, #tpu.memory_space<vmem>>) attributes {dimension_semantics = [#tpu.dimension_semantics<parallel>, #tpu.dimension_semantics<parallel>], iteration_bounds = array<i64: 2, 1>, scalar_prefetch = 0 : i64, scratch_operands = 0 : i64, tpu.core_type = #tpu.core_type<tc>, window_params = [{transform_indices = @transform_0, window_bounds = array<i64: 1, 8, 32>}, {pipeline_mode = #tpu.pipeline_mode<synchronous>, transform_indices = @transform_1, window_bounds = array<i64: 1, 32>}, {transform_indices = @transform_2, window_bounds = array<i64: 32, 64>}, {transform_indices = @transform_3, window_bounds = array<i64: 1, 64>}, {transform_indices = @transform_4, window_bounds = array<i64: 1, 8, 64>}]} {
    %c0 = arith.constant 0 : index
    %c0_0 = arith.constant 0 : index
    %c0_1 = arith.constant 0 : index
    %0 = vector.load %arg2[%c0, %c0_0, %c0_1] : memref<1x8x32xf32, #tpu.memory_space<vmem>>, vector<1x8x32xf32>
    %1 = vector.shape_cast %0 : vector<1x8x32xf32> to vector<8x32xf32>
    %c0_2 = arith.constant 0 : index
    %c0_3 = arith.constant 0 : index
    %2 = vector.load %arg3[%c0_2, %c0_3] : memref<1x32xf32, #tpu.memory_space<vmem>>, vector<1x32xf32>
    %3 = vector.shape_cast %2 : vector<1x32xf32> to vector<32xf32>
    %4 = arith.mulf %1, %1 : vector<8x32xf32>
    %cst = arith.constant dense<0.000000e+00> : vector<8xf32>
    %5 = vector.multi_reduction <add>, %4, %cst [1] : vector<8x32xf32> to vector<8xf32>
    %6 = vector.shape_cast %5 : vector<8xf32> to vector<8x1xf32>
    %cst_4 = arith.constant 3.200000e+01 : f32
    %7 = vector.broadcast %cst_4 : f32 to vector<8x1xf32>
    %8 = arith.divf %6, %7 : vector<8x1xf32>
    %cst_5 = arith.constant 9.99999997E-7 : f32
    %9 = vector.broadcast %cst_5 : f32 to vector<8x1xf32>
    %10 = arith.addf %8, %9 : vector<8x1xf32>
    %11 = math.rsqrt %10 : vector<8x1xf32>
    %12 = vector.broadcast %11 : vector<8x1xf32> to vector<8x32xf32>
    %13 = arith.mulf %1, %12 : vector<8x32xf32>
    %14 = vector.shape_cast %3 : vector<32xf32> to vector<1x32xf32>
    %15 = vector.broadcast %14 : vector<1x32xf32> to vector<8x32xf32>
    %16 = arith.mulf %13, %15 : vector<8x32xf32>
    %17 = arith.truncf %16 : vector<8x32xf32> to vector<8x32xbf16>
    %c0_6 = arith.constant 0 : index
    %c0_7 = arith.constant 0 : index
    %18 = vector.load %arg4[%c0_6, %c0_7] : memref<32x64xbf16, #tpu.memory_space<vmem>>, vector<32x64xbf16>
    %cst_8 = arith.constant dense<0.000000e+00> : vector<8x64xf32>
    %19 = tpu.matmul %17, %18, %cst_8 {dimension_numbers = #tpu.dot_dimension_numbers<[1], [0], [0], [1], [0, 0, 1, 1], [], []>} : vector<8x32xbf16>, vector<32x64xbf16>, vector<8x64xf32> -> vector<8x64xf32>
    %c0_9 = arith.constant 0 : index
    %c0_10 = arith.constant 0 : index
    %20 = vector.load %arg5[%c0_9, %c0_10] : memref<1x64xf32, #tpu.memory_space<vmem>>, vector<1x64xf32>
    %21 = vector.shape_cast %20 : vector<1x64xf32> to vector<64xf32>
    %22 = vector.shape_cast %21 : vector<64xf32> to vector<1x64xf32>
    %23 = vector.broadcast %22 : vector<1x64xf32> to vector<8x64xf32>
    %24 = arith.addf %19, %23 : vector<8x64xf32>
    %c0_11 = arith.constant 0 : index
    %c0_12 = arith.constant 0 : index
    %c0_13 = arith.constant 0 : index
    %25 = vector.load %arg6[%c0_11, %c0_12, %c0_13] : memref<1x8x64xf32, #tpu.memory_space<vmem>>, vector<1x8x64xf32>
    %26 = vector.shape_cast %25 : vector<1x8x64xf32> to vector<8x64xf32>
    %27 = vector.shape_cast %24 : vector<8x64xf32> to vector<1x8x64xf32>
    tpu.vector_store %arg6[%c0_11, %c0_12, %c0_13], %27 {strides = array<i32>} : memref<1x8x64xf32, #tpu.memory_space<vmem>>, vector<1x8x64xf32>,
    return
  }
  func.func @transform_0(%arg0: i32, %arg1: i32) -> (i32, i32, i32) {
    %c0_i32 = arith.constant 0 : i32
    %c0_i32_0 = arith.constant 0 : i32
    %c0_i32_1 = arith.constant 0 : i32
    return %arg0, %c0_i32, %c0_i32_0 : i32, i32, i32
  }
  func.func @transform_1(%arg0: i32, %arg1: i32) -> (i32, i32) {
    %c0_i32 = arith.constant 0 : i32
    %c0_i32_0 = arith.constant 0 : i32
    %c0_i32_1 = arith.constant 0 : i32
    return %c0_i32, %c0_i32_0 : i32, i32
  }
  func.func @transform_2(%arg0: i32, %arg1: i32) -> (i32, i32) {
    %c0_i32 = arith.constant 0 : i32
    %c0_i32_0 = arith.constant 0 : i32
    return %c0_i32, %arg1 : i32, i32
  }
  func.func @transform_3(%arg0: i32, %arg1: i32) -> (i32, i32) {
    %c0_i32 = arith.constant 0 : i32
    %c0_i32_0 = arith.constant 0 : i32
    return %c0_i32, %arg1 : i32, i32
  }
  func.func @transform_4(%arg0: i32, %arg1: i32) -> (i32, i32, i32) {
    %c0_i32 = arith.constant 0 : i32
    %c0_i32_0 = arith.constant 0 : i32
    return %arg0, %c0_i32, %arg1 : i32, i32, i32
  }
}

module attributes {stable_mosaic.version = 11 : i64} {
  func.func @_block_kernel(%arg0: i32, %arg1: memref<1x8x32xf32, #tpu.memory_space<vmem>>, %arg2: memref<1x32xf32, #tpu.memory_space<vmem>>, %arg3: memref<32x32xbf16, #tpu.memory_space<vmem>>, %arg4: memref<32x32xbf16, #tpu.memory_space<vmem>>, %arg5: memref<32x32xbf16, #tpu.memory_space<vmem>>, %arg6: memref<32x32xbf16, #tpu.memory_space<vmem>>, %arg7: memref<8x4xf32, #tpu.memory_space<vmem>>, %arg8: memref<8x4xf32, #tpu.memory_space<vmem>>, %arg9: memref<1x32xf32, #tpu.memory_space<vmem>>, %arg10: memref<32x128xbf16, #tpu.memory_space<vmem>>, %arg11: memref<1x128xf32, #tpu.memory_space<vmem>>, %arg12: memref<32x128xbf16, #tpu.memory_space<vmem>>, %arg13: memref<1x128xf32, #tpu.memory_space<vmem>>, %arg14: memref<128x32xbf16, #tpu.memory_space<vmem>>, %arg15: memref<1x32xf32, #tpu.memory_space<vmem>>, %arg16: memref<1x8x32xf32, #tpu.memory_space<vmem>>, %arg17: memref<8x32xf32, #tpu.memory_space<vmem>>) attributes {dimension_semantics = [#tpu.dimension_semantics<parallel>], iteration_bounds = array<i64: 2>, scalar_prefetch = 0 : i64, scratch_operands = 1 : i64, tpu.core_type = #tpu.core_type<tc>, window_params = [{transform_indices = @transform_0, window_bounds = array<i64: 1, 8, 32>}, {pipeline_mode = #tpu.pipeline_mode<synchronous>, transform_indices = @transform_1, window_bounds = array<i64: 1, 32>}, {pipeline_mode = #tpu.pipeline_mode<synchronous>, transform_indices = @transform_2, window_bounds = array<i64: 32, 32>}, {pipeline_mode = #tpu.pipeline_mode<synchronous>, transform_indices = @transform_3, window_bounds = array<i64: 32, 32>}, {pipeline_mode = #tpu.pipeline_mode<synchronous>, transform_indices = @transform_4, window_bounds = array<i64: 32, 32>}, {pipeline_mode = #tpu.pipeline_mode<synchronous>, transform_indices = @transform_5, window_bounds = array<i64: 32, 32>}, {pipeline_mode = #tpu.pipeline_mode<synchronous>, transform_indices = @transform_6, window_bounds = array<i64: 8, 4>}, {pipeline_mode = #tpu.pipeline_mode<synchronous>, transform_indices = @transform_7, window_bounds = array<i64: 8, 4>}, {pipeline_mode = #tpu.pipeline_mode<synchronous>, transform_indices = @transform_8, window_bounds = array<i64: 1, 32>}, {pipeline_mode = #tpu.pipeline_mode<synchronous>, transform_indices = @transform_9, window_bounds = array<i64: 32, 128>}, {pipeline_mode = #tpu.pipeline_mode<synchronous>, transform_indices = @transform_10, window_bounds = array<i64: 1, 128>}, {pipeline_mode = #tpu.pipeline_mode<synchronous>, transform_indices = @transform_11, window_bounds = array<i64: 32, 128>}, {pipeline_mode = #tpu.pipeline_mode<synchronous>, transform_indices = @transform_12, window_bounds = array<i64: 1, 128>}, {pipeline_mode = #tpu.pipeline_mode<synchronous>, transform_indices = @transform_13, window_bounds = array<i64: 128, 32>}, {pipeline_mode = #tpu.pipeline_mode<synchronous>, transform_indices = @transform_14, window_bounds = array<i64: 1, 32>}, {transform_indices = @transform_15, window_bounds = array<i64: 1, 8, 32>}]} {
    %c0 = arith.constant 0 : index
    %c0_0 = arith.constant 0 : index
    %c0_1 = arith.constant 0 : index
    %0 = vector.load %arg1[%c0, %c0_0, %c0_1] : memref<1x8x32xf32, #tpu.memory_space<vmem>>, vector<1x8x32xf32>
    %1 = vector.shape_cast %0 : vector<1x8x32xf32> to vector<8x32xf32>
    %c0_2 = arith.constant 0 : index
    %c0_3 = arith.constant 0 : index
    %2 = vector.load %arg2[%c0_2, %c0_3] : memref<1x32xf32, #tpu.memory_space<vmem>>, vector<1x32xf32>
    %3 = vector.shape_cast %2 : vector<1x32xf32> to vector<32xf32>
    %4 = arith.mulf %1, %1 : vector<8x32xf32>
    %cst = arith.constant dense<0.000000e+00> : vector<8xf32>
    %5 = vector.multi_reduction <add>, %4, %cst [1] : vector<8x32xf32> to vector<8xf32>
    %6 = vector.shape_cast %5 : vector<8xf32> to vector<8x1xf32>
    %cst_4 = arith.constant 3.200000e+01 : f32
    %7 = vector.broadcast %cst_4 : f32 to vector<8x1xf32>
    %8 = arith.divf %6, %7 : vector<8x1xf32>
    %cst_5 = arith.constant 9.99999997E-7 : f32
    %9 = vector.broadcast %cst_5 : f32 to vector<8x1xf32>
    %10 = arith.addf %8, %9 : vector<8x1xf32>
    %11 = math.rsqrt %10 : vector<8x1xf32>
    %12 = vector.broadcast %11 : vector<8x1xf32> to vector<8x32xf32>
    %13 = arith.mulf %1, %12 : vector<8x32xf32>
    %14 = vector.shape_cast %3 : vector<32xf32> to vector<1x32xf32>
    %15 = vector.broadcast %14 : vector<1x32xf32> to vector<8x32xf32>
    %16 = arith.mulf %13, %15 : vector<8x32xf32>
    %17 = arith.truncf %16 : vector<8x32xf32> to vector<8x32xbf16>
    %c0_6 = arith.constant 0 : index
    %c0_7 = arith.constant 0 : index
    %18 = vector.load %arg3[%c0_6, %c0_7] : memref<32x32xbf16, #tpu.memory_space<vmem>>, vector<32x32xbf16>
    %cst_8 = arith.constant dense<0.000000e+00> : vector<8x32xf32>
    %19 = tpu.matmul %17, %18, %cst_8 {dimension_numbers = #tpu.dot_dimension_numbers<[1], [0], [0], [1], [0, 0, 1, 1], [], []>} : vector<8x32xbf16>, vector<32x32xbf16>, vector<8x32xf32> -> vector<8x32xf32>
    %cst_9 = arith.constant 0.353553385 : f32
    %20 = vector.broadcast %cst_9 : f32 to vector<8x32xf32>
    %21 = arith.mulf %19, %20 : vector<8x32xf32>
    %c0_10 = arith.constant 0 : index
    %c0_11 = arith.constant 0 : index
    %22 = vector.load %arg4[%c0_10, %c0_11] : memref<32x32xbf16, #tpu.memory_space<vmem>>, vector<32x32xbf16>
    %cst_12 = arith.constant dense<0.000000e+00> : vector<8x32xf32>
    %23 = tpu.matmul %17, %22, %cst_12 {dimension_numbers = #tpu.dot_dimension_numbers<[1], [0], [0], [1], [0, 0, 1, 1], [], []>} : vector<8x32xbf16>, vector<32x32xbf16>, vector<8x32xf32> -> vector<8x32xf32>
    %c0_13 = arith.constant 0 : index
    %c0_14 = arith.constant 0 : index
    %24 = vector.load %arg5[%c0_13, %c0_14] : memref<32x32xbf16, #tpu.memory_space<vmem>>, vector<32x32xbf16>
    %cst_15 = arith.constant dense<0.000000e+00> : vector<8x32xf32>
    %25 = tpu.matmul %17, %24, %cst_15 {dimension_numbers = #tpu.dot_dimension_numbers<[1], [0], [0], [1], [0, 0, 1, 1], [], []>} : vector<8x32xbf16>, vector<32x32xbf16>, vector<8x32xf32> -> vector<8x32xf32>
    %c0_16 = arith.constant 0 : index
    %c0_17 = arith.constant 0 : index
    %26 = vector.load %arg7[%c0_16, %c0_17] : memref<8x4xf32, #tpu.memory_space<vmem>>, vector<8x4xf32>
    %c0_18 = arith.constant 0 : index
    %c0_19 = arith.constant 0 : index
    %27 = vector.load %arg8[%c0_18, %c0_19] : memref<8x4xf32, #tpu.memory_space<vmem>>, vector<8x4xf32>
    %28 = tpu.iota {dimensions = array<i32: 0>} : vector<8x8xi32>
    %29 = tpu.iota {dimensions = array<i32: 1>} : vector<8x8xi32>
    %30 = arith.cmpi sle, %29, %28 : vector<8x8xi32>
    %31 = vector.extract_strided_slice %21 {offsets = [0, 0], sizes = [8, 8], strides = [1, 1]} : vector<8x32xf32> to vector<8x8xf32>
    %32 = vector.extract_strided_slice %23 {offsets = [0, 0], sizes = [8, 8], strides = [1, 1]} : vector<8x32xf32> to vector<8x8xf32>
    %33 = vector.extract_strided_slice %25 {offsets = [0, 0], sizes = [8, 8], strides = [1, 1]} : vector<8x32xf32> to vector<8x8xf32>
    %34 = vector.extract_strided_slice %31 {offsets = [0, 0], sizes = [8, 4], strides = [1, 1]} : vector<8x8xf32> to vector<8x4xf32>
    %35 = vector.extract_strided_slice %31 {offsets = [0, 4], sizes = [8, 4], strides = [1, 1]} : vector<8x8xf32> to vector<8x4xf32>
    %36 = vector.extract_strided_slice %32 {offsets = [0, 0], sizes = [8, 4], strides = [1, 1]} : vector<8x8xf32> to vector<8x4xf32>
    %37 = vector.extract_strided_slice %32 {offsets = [0, 4], sizes = [8, 4], strides = [1, 1]} : vector<8x8xf32> to vector<8x4xf32>
    %38 = arith.mulf %34, %26 : vector<8x4xf32>
    %39 = arith.mulf %35, %27 : vector<8x4xf32>
    %40 = arith.subf %38, %39 : vector<8x4xf32>
    %41 = arith.truncf %40 : vector<8x4xf32> to vector<8x4xbf16>
    %42 = arith.mulf %34, %27 : vector<8x4xf32>
    %43 = arith.mulf %35, %26 : vector<8x4xf32>
    %44 = arith.addf %42, %43 : vector<8x4xf32>
    %45 = arith.truncf %44 : vector<8x4xf32> to vector<8x4xbf16>
    %46 = arith.mulf %36, %26 : vector<8x4xf32>
    %47 = arith.mulf %37, %27 : vector<8x4xf32>
    %48 = arith.subf %46, %47 : vector<8x4xf32>
    %49 = arith.truncf %48 : vector<8x4xf32> to vector<8x4xbf16>
    %50 = arith.mulf %36, %27 : vector<8x4xf32>
    %51 = arith.mulf %37, %26 : vector<8x4xf32>
    %52 = arith.addf %50, %51 : vector<8x4xf32>
    %53 = arith.truncf %52 : vector<8x4xf32> to vector<8x4xbf16>
    %cst_20 = arith.constant dense<0.000000e+00> : vector<8x8xf32>
    %54 = tpu.matmul %41, %49, %cst_20 {dimension_numbers = #tpu.dot_dimension_numbers<[1], [1], [0], [0], [0, 0, 1, 0], [], []>} : vector<8x4xbf16>, vector<8x4xbf16>, vector<8x8xf32> -> vector<8x8xf32>
    %cst_21 = arith.constant dense<0.000000e+00> : vector<8x8xf32>
    %55 = tpu.matmul %45, %53, %cst_21 {dimension_numbers = #tpu.dot_dimension_numbers<[1], [1], [0], [0], [0, 0, 1, 0], [], []>} : vector<8x4xbf16>, vector<8x4xbf16>, vector<8x8xf32> -> vector<8x8xf32>
    %56 = arith.addf %54, %55 : vector<8x8xf32>
    %cst_22 = arith.constant -1.000000e+30 : f32
    %57 = vector.broadcast %cst_22 : f32 to vector<8x8xf32>
    %58 = arith.select %30, %56, %57 : vector<8x8xi1>, vector<8x8xf32>
    %cst_23 = arith.constant dense<0xFF800000> : vector<8xf32>
    %59 = vector.multi_reduction <maximumf>, %58, %cst_23 [1] : vector<8x8xf32> to vector<8xf32>
    %60 = vector.shape_cast %59 : vector<8xf32> to vector<8x1xf32>
    %61 = vector.broadcast %60 : vector<8x1xf32> to vector<8x8xf32>
    %62 = arith.subf %58, %61 : vector<8x8xf32>
    %63 = math.exp %62 : vector<8x8xf32>
    %cst_24 = arith.constant dense<0.000000e+00> : vector<8xf32>
    %64 = vector.multi_reduction <add>, %63, %cst_24 [1] : vector<8x8xf32> to vector<8xf32>
    %65 = vector.shape_cast %64 : vector<8xf32> to vector<8x1xf32>
    %66 = tpu.reciprocal %65 {approx = true} : vector<8x1xf32> -> vector<8x1xf32>
    %67 = vector.broadcast %66 : vector<8x1xf32> to vector<8x8xf32>
    %68 = arith.mulf %63, %67 : vector<8x8xf32>
    %69 = arith.truncf %68 : vector<8x8xf32> to vector<8x8xbf16>
    %70 = arith.truncf %33 : vector<8x8xf32> to vector<8x8xbf16>
    %cst_25 = arith.constant dense<0.000000e+00> : vector<8x8xf32>
    %71 = tpu.matmul %69, %70, %cst_25 {dimension_numbers = #tpu.dot_dimension_numbers<[1], [0], [0], [1], [0, 0, 1, 1], [], []>} : vector<8x8xbf16>, vector<8x8xbf16>, vector<8x8xf32> -> vector<8x8xf32>
    %c0_26 = arith.constant 0 : index
    %c0_27 = arith.constant 0 : index
    %72 = vector.load %arg17[%c0_26, %c0_27] : memref<8x32xf32, #tpu.memory_space<vmem>>, vector<8x8xf32>
    tpu.vector_store %arg17[%c0_26, %c0_27], %71 {strides = array<i32>} : memref<8x32xf32, #tpu.memory_space<vmem>>, vector<8x8xf32>,
    %73 = vector.extract_strided_slice %21 {offsets = [0, 8], sizes = [8, 8], strides = [1, 1]} : vector<8x32xf32> to vector<8x8xf32>
    %74 = vector.extract_strided_slice %23 {offsets = [0, 8], sizes = [8, 8], strides = [1, 1]} : vector<8x32xf32> to vector<8x8xf32>
    %75 = vector.extract_strided_slice %25 {offsets = [0, 8], sizes = [8, 8], strides = [1, 1]} : vector<8x32xf32> to vector<8x8xf32>
    %76 = vector.extract_strided_slice %73 {offsets = [0, 0], sizes = [8, 4], strides = [1, 1]} : vector<8x8xf32> to vector<8x4xf32>
    %77 = vector.extract_strided_slice %73 {offsets = [0, 4], sizes = [8, 4], strides = [1, 1]} : vector<8x8xf32> to vector<8x4xf32>
    %78 = vector.extract_strided_slice %74 {offsets = [0, 0], sizes = [8, 4], strides = [1, 1]} : vector<8x8xf32> to vector<8x4xf32>
    %79 = vector.extract_strided_slice %74 {offsets = [0, 4], sizes = [8, 4], strides = [1, 1]} : vector<8x8xf32> to vector<8x4xf32>
    %80 = arith.mulf %76, %26 : vector<8x4xf32>
    %81 = arith.mulf %77, %27 : vector<8x4xf32>
    %82 = arith.subf %80, %81 : vector<8x4xf32>
    %83 = arith.truncf %82 : vector<8x4xf32> to vector<8x4xbf16>
    %84 = arith.mulf %76, %27 : vector<8x4xf32>
    %85 = arith.mulf %77, %26 : vector<8x4xf32>
    %86 = arith.addf %84, %85 : vector<8x4xf32>
    %87 = arith.truncf %86 : vector<8x4xf32> to vector<8x4xbf16>
    %88 = arith.mulf %78, %26 : vector<8x4xf32>
    %89 = arith.mulf %79, %27 : vector<8x4xf32>
    %90 = arith.subf %88, %89 : vector<8x4xf32>
    %91 = arith.truncf %90 : vector<8x4xf32> to vector<8x4xbf16>
    %92 = arith.mulf %78, %27 : vector<8x4xf32>
    %93 = arith.mulf %79, %26 : vector<8x4xf32>
    %94 = arith.addf %92, %93 : vector<8x4xf32>
    %95 = arith.truncf %94 : vector<8x4xf32> to vector<8x4xbf16>
    %cst_28 = arith.constant dense<0.000000e+00> : vector<8x8xf32>
    %96 = tpu.matmul %83, %91, %cst_28 {dimension_numbers = #tpu.dot_dimension_numbers<[1], [1], [0], [0], [0, 0, 1, 0], [], []>} : vector<8x4xbf16>, vector<8x4xbf16>, vector<8x8xf32> -> vector<8x8xf32>
    %cst_29 = arith.constant dense<0.000000e+00> : vector<8x8xf32>
    %97 = tpu.matmul %87, %95, %cst_29 {dimension_numbers = #tpu.dot_dimension_numbers<[1], [1], [0], [0], [0, 0, 1, 0], [], []>} : vector<8x4xbf16>, vector<8x4xbf16>, vector<8x8xf32> -> vector<8x8xf32>
    %98 = arith.addf %96, %97 : vector<8x8xf32>
    %cst_30 = arith.constant -1.000000e+30 : f32
    %99 = vector.broadcast %cst_30 : f32 to vector<8x8xf32>
    %100 = arith.select %30, %98, %99 : vector<8x8xi1>, vector<8x8xf32>
    %cst_31 = arith.constant dense<0xFF800000> : vector<8xf32>
    %101 = vector.multi_reduction <maximumf>, %100, %cst_31 [1] : vector<8x8xf32> to vector<8xf32>
    %102 = vector.shape_cast %101 : vector<8xf32> to vector<8x1xf32>
    %103 = vector.broadcast %102 : vector<8x1xf32> to vector<8x8xf32>
    %104 = arith.subf %100, %103 : vector<8x8xf32>
    %105 = math.exp %104 : vector<8x8xf32>
    %cst_32 = arith.constant dense<0.000000e+00> : vector<8xf32>
    %106 = vector.multi_reduction <add>, %105, %cst_32 [1] : vector<8x8xf32> to vector<8xf32>
    %107 = vector.shape_cast %106 : vector<8xf32> to vector<8x1xf32>
    %108 = tpu.reciprocal %107 {approx = true} : vector<8x1xf32> -> vector<8x1xf32>
    %109 = vector.broadcast %108 : vector<8x1xf32> to vector<8x8xf32>
    %110 = arith.mulf %105, %109 : vector<8x8xf32>
    %111 = arith.truncf %110 : vector<8x8xf32> to vector<8x8xbf16>
    %112 = arith.truncf %75 : vector<8x8xf32> to vector<8x8xbf16>
    %cst_33 = arith.constant dense<0.000000e+00> : vector<8x8xf32>
    %113 = tpu.matmul %111, %112, %cst_33 {dimension_numbers = #tpu.dot_dimension_numbers<[1], [0], [0], [1], [0, 0, 1, 1], [], []>} : vector<8x8xbf16>, vector<8x8xbf16>, vector<8x8xf32> -> vector<8x8xf32>
    %c0_34 = arith.constant 0 : index
    %c8 = arith.constant 8 : index
    %114 = vector.load %arg17[%c0_34, %c8] : memref<8x32xf32, #tpu.memory_space<vmem>>, vector<8x8xf32>
    tpu.vector_store %arg17[%c0_34, %c8], %113 {strides = array<i32>} : memref<8x32xf32, #tpu.memory_space<vmem>>, vector<8x8xf32>,
    %115 = vector.extract_strided_slice %21 {offsets = [0, 16], sizes = [8, 8], strides = [1, 1]} : vector<8x32xf32> to vector<8x8xf32>
    %116 = vector.extract_strided_slice %23 {offsets = [0, 16], sizes = [8, 8], strides = [1, 1]} : vector<8x32xf32> to vector<8x8xf32>
    %117 = vector.extract_strided_slice %25 {offsets = [0, 16], sizes = [8, 8], strides = [1, 1]} : vector<8x32xf32> to vector<8x8xf32>
    %118 = vector.extract_strided_slice %115 {offsets = [0, 0], sizes = [8, 4], strides = [1, 1]} : vector<8x8xf32> to vector<8x4xf32>
    %119 = vector.extract_strided_slice %115 {offsets = [0, 4], sizes = [8, 4], strides = [1, 1]} : vector<8x8xf32> to vector<8x4xf32>
    %120 = vector.extract_strided_slice %116 {offsets = [0, 0], sizes = [8, 4], strides = [1, 1]} : vector<8x8xf32> to vector<8x4xf32>
    %121 = vector.extract_strided_slice %116 {offsets = [0, 4], sizes = [8, 4], strides = [1, 1]} : vector<8x8xf32> to vector<8x4xf32>
    %122 = arith.mulf %118, %26 : vector<8x4xf32>
    %123 = arith.mulf %119, %27 : vector<8x4xf32>
    %124 = arith.subf %122, %123 : vector<8x4xf32>
    %125 = arith.truncf %124 : vector<8x4xf32> to vector<8x4xbf16>
    %126 = arith.mulf %118, %27 : vector<8x4xf32>
    %127 = arith.mulf %119, %26 : vector<8x4xf32>
    %128 = arith.addf %126, %127 : vector<8x4xf32>
    %129 = arith.truncf %128 : vector<8x4xf32> to vector<8x4xbf16>
    %130 = arith.mulf %120, %26 : vector<8x4xf32>
    %131 = arith.mulf %121, %27 : vector<8x4xf32>
    %132 = arith.subf %130, %131 : vector<8x4xf32>
    %133 = arith.truncf %132 : vector<8x4xf32> to vector<8x4xbf16>
    %134 = arith.mulf %120, %27 : vector<8x4xf32>
    %135 = arith.mulf %121, %26 : vector<8x4xf32>
    %136 = arith.addf %134, %135 : vector<8x4xf32>
    %137 = arith.truncf %136 : vector<8x4xf32> to vector<8x4xbf16>
    %cst_35 = arith.constant dense<0.000000e+00> : vector<8x8xf32>
    %138 = tpu.matmul %125, %133, %cst_35 {dimension_numbers = #tpu.dot_dimension_numbers<[1], [1], [0], [0], [0, 0, 1, 0], [], []>} : vector<8x4xbf16>, vector<8x4xbf16>, vector<8x8xf32> -> vector<8x8xf32>
    %cst_36 = arith.constant dense<0.000000e+00> : vector<8x8xf32>
    %139 = tpu.matmul %129, %137, %cst_36 {dimension_numbers = #tpu.dot_dimension_numbers<[1], [1], [0], [0], [0, 0, 1, 0], [], []>} : vector<8x4xbf16>, vector<8x4xbf16>, vector<8x8xf32> -> vector<8x8xf32>
    %140 = arith.addf %138, %139 : vector<8x8xf32>
    %cst_37 = arith.constant -1.000000e+30 : f32
    %141 = vector.broadcast %cst_37 : f32 to vector<8x8xf32>
    %142 = arith.select %30, %140, %141 : vector<8x8xi1>, vector<8x8xf32>
    %cst_38 = arith.constant dense<0xFF800000> : vector<8xf32>
    %143 = vector.multi_reduction <maximumf>, %142, %cst_38 [1] : vector<8x8xf32> to vector<8xf32>
    %144 = vector.shape_cast %143 : vector<8xf32> to vector<8x1xf32>
    %145 = vector.broadcast %144 : vector<8x1xf32> to vector<8x8xf32>
    %146 = arith.subf %142, %145 : vector<8x8xf32>
    %147 = math.exp %146 : vector<8x8xf32>
    %cst_39 = arith.constant dense<0.000000e+00> : vector<8xf32>
    %148 = vector.multi_reduction <add>, %147, %cst_39 [1] : vector<8x8xf32> to vector<8xf32>
    %149 = vector.shape_cast %148 : vector<8xf32> to vector<8x1xf32>
    %150 = tpu.reciprocal %149 {approx = true} : vector<8x1xf32> -> vector<8x1xf32>
    %151 = vector.broadcast %150 : vector<8x1xf32> to vector<8x8xf32>
    %152 = arith.mulf %147, %151 : vector<8x8xf32>
    %153 = arith.truncf %152 : vector<8x8xf32> to vector<8x8xbf16>
    %154 = arith.truncf %117 : vector<8x8xf32> to vector<8x8xbf16>
    %cst_40 = arith.constant dense<0.000000e+00> : vector<8x8xf32>
    %155 = tpu.matmul %153, %154, %cst_40 {dimension_numbers = #tpu.dot_dimension_numbers<[1], [0], [0], [1], [0, 0, 1, 1], [], []>} : vector<8x8xbf16>, vector<8x8xbf16>, vector<8x8xf32> -> vector<8x8xf32>
    %c0_41 = arith.constant 0 : index
    %c16 = arith.constant 16 : index
    %156 = vector.load %arg17[%c0_41, %c16] : memref<8x32xf32, #tpu.memory_space<vmem>>, vector<8x8xf32>
    tpu.vector_store %arg17[%c0_41, %c16], %155 {strides = array<i32>} : memref<8x32xf32, #tpu.memory_space<vmem>>, vector<8x8xf32>,
    %157 = vector.extract_strided_slice %21 {offsets = [0, 24], sizes = [8, 8], strides = [1, 1]} : vector<8x32xf32> to vector<8x8xf32>
    %158 = vector.extract_strided_slice %23 {offsets = [0, 24], sizes = [8, 8], strides = [1, 1]} : vector<8x32xf32> to vector<8x8xf32>
    %159 = vector.extract_strided_slice %25 {offsets = [0, 24], sizes = [8, 8], strides = [1, 1]} : vector<8x32xf32> to vector<8x8xf32>
    %160 = vector.extract_strided_slice %157 {offsets = [0, 0], sizes = [8, 4], strides = [1, 1]} : vector<8x8xf32> to vector<8x4xf32>
    %161 = vector.extract_strided_slice %157 {offsets = [0, 4], sizes = [8, 4], strides = [1, 1]} : vector<8x8xf32> to vector<8x4xf32>
    %162 = vector.extract_strided_slice %158 {offsets = [0, 0], sizes = [8, 4], strides = [1, 1]} : vector<8x8xf32> to vector<8x4xf32>
    %163 = vector.extract_strided_slice %158 {offsets = [0, 4], sizes = [8, 4], strides = [1, 1]} : vector<8x8xf32> to vector<8x4xf32>
    %164 = arith.mulf %160, %26 : vector<8x4xf32>
    %165 = arith.mulf %161, %27 : vector<8x4xf32>
    %166 = arith.subf %164, %165 : vector<8x4xf32>
    %167 = arith.truncf %166 : vector<8x4xf32> to vector<8x4xbf16>
    %168 = arith.mulf %160, %27 : vector<8x4xf32>
    %169 = arith.mulf %161, %26 : vector<8x4xf32>
    %170 = arith.addf %168, %169 : vector<8x4xf32>
    %171 = arith.truncf %170 : vector<8x4xf32> to vector<8x4xbf16>
    %172 = arith.mulf %162, %26 : vector<8x4xf32>
    %173 = arith.mulf %163, %27 : vector<8x4xf32>
    %174 = arith.subf %172, %173 : vector<8x4xf32>
    %175 = arith.truncf %174 : vector<8x4xf32> to vector<8x4xbf16>
    %176 = arith.mulf %162, %27 : vector<8x4xf32>
    %177 = arith.mulf %163, %26 : vector<8x4xf32>
    %178 = arith.addf %176, %177 : vector<8x4xf32>
    %179 = arith.truncf %178 : vector<8x4xf32> to vector<8x4xbf16>
    %cst_42 = arith.constant dense<0.000000e+00> : vector<8x8xf32>
    %180 = tpu.matmul %167, %175, %cst_42 {dimension_numbers = #tpu.dot_dimension_numbers<[1], [1], [0], [0], [0, 0, 1, 0], [], []>} : vector<8x4xbf16>, vector<8x4xbf16>, vector<8x8xf32> -> vector<8x8xf32>
    %cst_43 = arith.constant dense<0.000000e+00> : vector<8x8xf32>
    %181 = tpu.matmul %171, %179, %cst_43 {dimension_numbers = #tpu.dot_dimension_numbers<[1], [1], [0], [0], [0, 0, 1, 0], [], []>} : vector<8x4xbf16>, vector<8x4xbf16>, vector<8x8xf32> -> vector<8x8xf32>
    %182 = arith.addf %180, %181 : vector<8x8xf32>
    %cst_44 = arith.constant -1.000000e+30 : f32
    %183 = vector.broadcast %cst_44 : f32 to vector<8x8xf32>
    %184 = arith.select %30, %182, %183 : vector<8x8xi1>, vector<8x8xf32>
    %cst_45 = arith.constant dense<0xFF800000> : vector<8xf32>
    %185 = vector.multi_reduction <maximumf>, %184, %cst_45 [1] : vector<8x8xf32> to vector<8xf32>
    %186 = vector.shape_cast %185 : vector<8xf32> to vector<8x1xf32>
    %187 = vector.broadcast %186 : vector<8x1xf32> to vector<8x8xf32>
    %188 = arith.subf %184, %187 : vector<8x8xf32>
    %189 = math.exp %188 : vector<8x8xf32>
    %cst_46 = arith.constant dense<0.000000e+00> : vector<8xf32>
    %190 = vector.multi_reduction <add>, %189, %cst_46 [1] : vector<8x8xf32> to vector<8xf32>
    %191 = vector.shape_cast %190 : vector<8xf32> to vector<8x1xf32>
    %192 = tpu.reciprocal %191 {approx = true} : vector<8x1xf32> -> vector<8x1xf32>
    %193 = vector.broadcast %192 : vector<8x1xf32> to vector<8x8xf32>
    %194 = arith.mulf %189, %193 : vector<8x8xf32>
    %195 = arith.truncf %194 : vector<8x8xf32> to vector<8x8xbf16>
    %196 = arith.truncf %159 : vector<8x8xf32> to vector<8x8xbf16>
    %cst_47 = arith.constant dense<0.000000e+00> : vector<8x8xf32>
    %197 = tpu.matmul %195, %196, %cst_47 {dimension_numbers = #tpu.dot_dimension_numbers<[1], [0], [0], [1], [0, 0, 1, 1], [], []>} : vector<8x8xbf16>, vector<8x8xbf16>, vector<8x8xf32> -> vector<8x8xf32>
    %c0_48 = arith.constant 0 : index
    %c24 = arith.constant 24 : index
    %198 = vector.load %arg17[%c0_48, %c24] : memref<8x32xf32, #tpu.memory_space<vmem>>, vector<8x8xf32>
    tpu.vector_store %arg17[%c0_48, %c24], %197 {strides = array<i32>} : memref<8x32xf32, #tpu.memory_space<vmem>>, vector<8x8xf32>,
    %c0_49 = arith.constant 0 : index
    %c0_50 = arith.constant 0 : index
    %199 = vector.load %arg17[%c0_49, %c0_50] : memref<8x32xf32, #tpu.memory_space<vmem>>, vector<8x32xf32>
    %200 = arith.truncf %199 : vector<8x32xf32> to vector<8x32xbf16>
    %c0_51 = arith.constant 0 : index
    %c0_52 = arith.constant 0 : index
    %201 = vector.load %arg6[%c0_51, %c0_52] : memref<32x32xbf16, #tpu.memory_space<vmem>>, vector<32x32xbf16>
    %cst_53 = arith.constant dense<0.000000e+00> : vector<8x32xf32>
    %202 = tpu.matmul %200, %201, %cst_53 {dimension_numbers = #tpu.dot_dimension_numbers<[1], [0], [0], [1], [0, 0, 1, 1], [], []>} : vector<8x32xbf16>, vector<32x32xbf16>, vector<8x32xf32> -> vector<8x32xf32>
    %203 = arith.addf %1, %202 : vector<8x32xf32>
    %c0_54 = arith.constant 0 : index
    %c0_55 = arith.constant 0 : index
    %204 = vector.load %arg9[%c0_54, %c0_55] : memref<1x32xf32, #tpu.memory_space<vmem>>, vector<1x32xf32>
    %205 = vector.shape_cast %204 : vector<1x32xf32> to vector<32xf32>
    %206 = arith.mulf %203, %203 : vector<8x32xf32>
    %cst_56 = arith.constant dense<0.000000e+00> : vector<8xf32>
    %207 = vector.multi_reduction <add>, %206, %cst_56 [1] : vector<8x32xf32> to vector<8xf32>
    %208 = vector.shape_cast %207 : vector<8xf32> to vector<8x1xf32>
    %cst_57 = arith.constant 3.200000e+01 : f32
    %209 = vector.broadcast %cst_57 : f32 to vector<8x1xf32>
    %210 = arith.divf %208, %209 : vector<8x1xf32>
    %cst_58 = arith.constant 9.99999997E-7 : f32
    %211 = vector.broadcast %cst_58 : f32 to vector<8x1xf32>
    %212 = arith.addf %210, %211 : vector<8x1xf32>
    %213 = math.rsqrt %212 : vector<8x1xf32>
    %214 = vector.broadcast %213 : vector<8x1xf32> to vector<8x32xf32>
    %215 = arith.mulf %203, %214 : vector<8x32xf32>
    %216 = vector.shape_cast %205 : vector<32xf32> to vector<1x32xf32>
    %217 = vector.broadcast %216 : vector<1x32xf32> to vector<8x32xf32>
    %218 = arith.mulf %215, %217 : vector<8x32xf32>
    %219 = arith.truncf %218 : vector<8x32xf32> to vector<8x32xbf16>
    %c0_59 = arith.constant 0 : index
    %c0_60 = arith.constant 0 : index
    %220 = vector.load %arg10[%c0_59, %c0_60] : memref<32x128xbf16, #tpu.memory_space<vmem>>, vector<32x128xbf16>
    %cst_61 = arith.constant dense<0.000000e+00> : vector<8x128xf32>
    %221 = tpu.matmul %219, %220, %cst_61 {dimension_numbers = #tpu.dot_dimension_numbers<[1], [0], [0], [1], [0, 0, 1, 1], [], []>} : vector<8x32xbf16>, vector<32x128xbf16>, vector<8x128xf32> -> vector<8x128xf32>
    %c0_62 = arith.constant 0 : index
    %c0_63 = arith.constant 0 : index
    %222 = vector.load %arg11[%c0_62, %c0_63] : memref<1x128xf32, #tpu.memory_space<vmem>>, vector<1x128xf32>
    %223 = vector.shape_cast %222 : vector<1x128xf32> to vector<128xf32>
    %224 = vector.shape_cast %223 : vector<128xf32> to vector<1x128xf32>
    %225 = vector.broadcast %224 : vector<1x128xf32> to vector<8x128xf32>
    %226 = arith.addf %221, %225 : vector<8x128xf32>
    %c0_64 = arith.constant 0 : index
    %c0_65 = arith.constant 0 : index
    %227 = vector.load %arg12[%c0_64, %c0_65] : memref<32x128xbf16, #tpu.memory_space<vmem>>, vector<32x128xbf16>
    %cst_66 = arith.constant dense<0.000000e+00> : vector<8x128xf32>
    %228 = tpu.matmul %219, %227, %cst_66 {dimension_numbers = #tpu.dot_dimension_numbers<[1], [0], [0], [1], [0, 0, 1, 1], [], []>} : vector<8x32xbf16>, vector<32x128xbf16>, vector<8x128xf32> -> vector<8x128xf32>
    %c0_67 = arith.constant 0 : index
    %c0_68 = arith.constant 0 : index
    %229 = vector.load %arg13[%c0_67, %c0_68] : memref<1x128xf32, #tpu.memory_space<vmem>>, vector<1x128xf32>
    %230 = vector.shape_cast %229 : vector<1x128xf32> to vector<128xf32>
    %231 = vector.shape_cast %230 : vector<128xf32> to vector<1x128xf32>
    %232 = vector.broadcast %231 : vector<1x128xf32> to vector<8x128xf32>
    %233 = arith.addf %228, %232 : vector<8x128xf32>
    %cst_69 = arith.constant 0.000000e+00 : f32
    %234 = vector.broadcast %cst_69 : f32 to vector<8x128xf32>
    %235 = arith.subf %234, %226 : vector<8x128xf32>
    %236 = math.exp %235 : vector<8x128xf32>
    %cst_70 = arith.constant 1.000000e+00 : f32
    %237 = vector.broadcast %cst_70 : f32 to vector<8x128xf32>
    %238 = arith.addf %237, %236 : vector<8x128xf32>
    %cst_71 = arith.constant 1.000000e+00 : f32
    %239 = vector.broadcast %cst_71 : f32 to vector<8x128xf32>
    %240 = arith.divf %239, %238 : vector<8x128xf32>
    %241 = arith.mulf %226, %240 : vector<8x128xf32>
    %242 = arith.mulf %241, %233 : vector<8x128xf32>
    %243 = arith.truncf %242 : vector<8x128xf32> to vector<8x128xbf16>
    %c0_72 = arith.constant 0 : index
    %c0_73 = arith.constant 0 : index
    %244 = vector.load %arg14[%c0_72, %c0_73] : memref<128x32xbf16, #tpu.memory_space<vmem>>, vector<128x32xbf16>
    %cst_74 = arith.constant dense<0.000000e+00> : vector<8x32xf32>
    %245 = tpu.matmul %243, %244, %cst_74 {dimension_numbers = #tpu.dot_dimension_numbers<[1], [0], [0], [1], [0, 0, 1, 1], [], []>} : vector<8x128xbf16>, vector<128x32xbf16>, vector<8x32xf32> -> vector<8x32xf32>
    %c0_75 = arith.constant 0 : index
    %c0_76 = arith.constant 0 : index
    %246 = vector.load %arg15[%c0_75, %c0_76] : memref<1x32xf32, #tpu.memory_space<vmem>>, vector<1x32xf32>
    %247 = vector.shape_cast %246 : vector<1x32xf32> to vector<32xf32>
    %248 = vector.shape_cast %247 : vector<32xf32> to vector<1x32xf32>
    %249 = vector.broadcast %248 : vector<1x32xf32> to vector<8x32xf32>
    %250 = arith.addf %245, %249 : vector<8x32xf32>
    %251 = arith.addf %203, %250 : vector<8x32xf32>
    %c0_77 = arith.constant 0 : index
    %c0_78 = arith.constant 0 : index
    %c0_79 = arith.constant 0 : index
    %252 = vector.load %arg16[%c0_77, %c0_78, %c0_79] : memref<1x8x32xf32, #tpu.memory_space<vmem>>, vector<1x8x32xf32>
    %253 = vector.shape_cast %252 : vector<1x8x32xf32> to vector<8x32xf32>
    %254 = vector.shape_cast %251 : vector<8x32xf32> to vector<1x8x32xf32>
    tpu.vector_store %arg16[%c0_77, %c0_78, %c0_79], %254 {strides = array<i32>} : memref<1x8x32xf32, #tpu.memory_space<vmem>>, vector<1x8x32xf32>,
    return
  }
  func.func @transform_0(%arg0: i32) -> (i32, i32, i32) {
    %c0_i32 = arith.constant 0 : i32
    %c0_i32_0 = arith.constant 0 : i32
    %c0_i32_1 = arith.constant 0 : i32
    return %arg0, %c0_i32, %c0_i32_0 : i32, i32, i32
  }
  func.func @transform_1(%arg0: i32) -> (i32, i32) {
    %c0_i32 = arith.constant 0 : i32
    %c0_i32_0 = arith.constant 0 : i32
    %c0_i32_1 = arith.constant 0 : i32
    return %c0_i32, %c0_i32_0 : i32, i32
  }
  func.func @transform_2(%arg0: i32) -> (i32, i32) {
    %c0_i32 = arith.constant 0 : i32
    %c0_i32_0 = arith.constant 0 : i32
    %c0_i32_1 = arith.constant 0 : i32
    return %c0_i32, %c0_i32_0 : i32, i32
  }
  func.func @transform_3(%arg0: i32) -> (i32, i32) {
    %c0_i32 = arith.constant 0 : i32
    %c0_i32_0 = arith.constant 0 : i32
    %c0_i32_1 = arith.constant 0 : i32
    return %c0_i32, %c0_i32_0 : i32, i32
  }
  func.func @transform_4(%arg0: i32) -> (i32, i32) {
    %c0_i32 = arith.constant 0 : i32
    %c0_i32_0 = arith.constant 0 : i32
    %c0_i32_1 = arith.constant 0 : i32
    return %c0_i32, %c0_i32_0 : i32, i32
  }
  func.func @transform_5(%arg0: i32) -> (i32, i32) {
    %c0_i32 = arith.constant 0 : i32
    %c0_i32_0 = arith.constant 0 : i32
    %c0_i32_1 = arith.constant 0 : i32
    return %c0_i32, %c0_i32_0 : i32, i32
  }
  func.func @transform_6(%arg0: i32) -> (i32, i32) {
    %c0_i32 = arith.constant 0 : i32
    %c0_i32_0 = arith.constant 0 : i32
    %c0_i32_1 = arith.constant 0 : i32
    return %c0_i32, %c0_i32_0 : i32, i32
  }
  func.func @transform_7(%arg0: i32) -> (i32, i32) {
    %c0_i32 = arith.constant 0 : i32
    %c0_i32_0 = arith.constant 0 : i32
    %c0_i32_1 = arith.constant 0 : i32
    return %c0_i32, %c0_i32_0 : i32, i32
  }
  func.func @transform_8(%arg0: i32) -> (i32, i32) {
    %c0_i32 = arith.constant 0 : i32
    %c0_i32_0 = arith.constant 0 : i32
    %c0_i32_1 = arith.constant 0 : i32
    return %c0_i32, %c0_i32_0 : i32, i32
  }
  func.func @transform_9(%arg0: i32) -> (i32, i32) {
    %c0_i32 = arith.constant 0 : i32
    %c0_i32_0 = arith.constant 0 : i32
    %c0_i32_1 = arith.constant 0 : i32
    return %c0_i32, %c0_i32_0 : i32, i32
  }
  func.func @transform_10(%arg0: i32) -> (i32, i32) {
    %c0_i32 = arith.constant 0 : i32
    %c0_i32_0 = arith.constant 0 : i32
    %c0_i32_1 = arith.constant 0 : i32
    return %c0_i32, %c0_i32_0 : i32, i32
  }
  func.func @transform_11(%arg0: i32) -> (i32, i32) {
    %c0_i32 = arith.constant 0 : i32
    %c0_i32_0 = arith.constant 0 : i32
    %c0_i32_1 = arith.constant 0 : i32
    return %c0_i32, %c0_i32_0 : i32, i32
  }
  func.func @transform_12(%arg0: i32) -> (i32, i32) {
    %c0_i32 = arith.constant 0 : i32
    %c0_i32_0 = arith.constant 0 : i32
    %c0_i32_1 = arith.constant 0 : i32
    return %c0_i32, %c0_i32_0 : i32, i32
  }
  func.func @transform_13(%arg0: i32) -> (i32, i32) {
    %c0_i32 = arith.constant 0 : i32
    %c0_i32_0 = arith.constant 0 : i32
    %c0_i32_1 = arith.constant 0 : i32
    return %c0_i32, %c0_i32_0 : i32, i32
  }
  func.func @transform_14(%arg0: i32) -> (i32, i32) {
    %c0_i32 = arith.constant 0 : i32
    %c0_i32_0 = arith.constant 0 : i32
    %c0_i32_1 = arith.constant 0 : i32
    return %c0_i32, %c0_i32_0 : i32, i32
  }
  func.func @transform_15(%arg0: i32) -> (i32, i32, i32) {
    %c0_i32 = arith.constant 0 : i32
    %c0_i32_0 = arith.constant 0 : i32
    %c0_i32_1 = arith.constant 0 : i32
    return %arg0, %c0_i32, %c0_i32_0 : i32, i32, i32
  }
}

</mosaic_0001>

<llo_original>
// kernel: llm_forward.5
$region0: #{llm_forward.5}
  #allocation0 [shape = 'u32[]', space=smem, size = 0x4, offset = 0x4, fixed_abs, tag = 'smem constant byte address 0x4 - core index']
  #allocation1 [shape = 'u32[144,128]{1,0:T(1,128)}', space=vmem, size = 0x12000, scoped, tag = 'internal scratch']
  %s0 = inlined_call_operand.vmem [shape: f32[2,8,32], index: 0, kind: input, shape index: {}]
  %s1 = inlined_call_operand.vmem [shape: f32[1,32], index: 1, kind: input, shape index: {}]
  %s2 = inlined_call_operand.vmem [shape: bf16[32,64], index: 2, kind: input, shape index: {}]
  %s3 = inlined_call_operand.vmem [shape: f32[1,64], index: 3, kind: input, shape index: {}]
  %s4 = inlined_call_operand.hbm [shape: f32[2,8,64], index: 4, kind: output, shape index: {}]
  %s5 = sld [smem:[#allocation0]]
  $region49: #{llm_forward.5} parent=0
    _
  %s7 = ssub.s32 1, %s5
  %s8 = scalar_select 0, %s7, %s5
  $region1: #{llm_forward.5} parent=0
    #allocation2 [shape = 'u8[8192]{0}', space=vmem, size = 0x2000, scoped, tag = 'output window, operand 0']
    #allocation3 [shape = 's32[2]{0}', space=sflag, size = 0x8, scoped, tag = 'scoped memory for llm_forward.5']
    %9 = vsyncpa [#allocation3], 0
    %s10 = scalar_lea.sflag [#allocation3], 1
    %11 = vsyncpa %s10, 0
    loop: start=0, step=1, limit=4
    $region2: #{llm_forward.5} parent=1 // loop_pre_header
      _
    $region3: #{llm_forward.5} parent=1 // loop_header
      %s13 = sphi 0, %s17
      %p14 = scmp.ge.s32.totalorder %s13, 4
      %s20 = sphi 0, %s32
      %s21 = sphi 0, %s28
      %s22 = sphi 0, %s20
      %s23 = sphi 0, %s21
      %s24 = sphi 0, %s22
      %s25 = sphi 0, %s23
      %s35 = sphi 0, %s37
      %s38 = sphi 0, %s35
      %s39 = sphi 0, %s38
      %s55 = sphi 0, %s39
      %s59 = sphi 0, %s59
      %s61 = sphi 0, %s59
      %s62 = sphi 0, %s61
      %s76 = sphi 0, %s62
      %s82 = sphi 0, %s84
      %s85 = sphi 0, %s82
      %s86 = sphi 0, %s85
      %s102 = sphi 0, %s86
      %s108 = sphi 0, %s110
      %s111 = sphi 0, %s108
      %s112 = sphi 0, %s111
      %s128 = sphi 0, %s112
      %s136 = sphi 0, %s138
      %s139 = sphi 0, %s136
      %s140 = sphi 0, %s139
      %s156 = sphi 0, %s140
    $region4: #{llm_forward.5} parent=1 // loop_header_branch
      %16 = sbr.rel (%p14) target = $region8
    $region5: #{llm_forward.5} parent=1 // loop_body
      %s18 = ssub.s32 %s13, 1
      %s19 = ssub.s32 %s13, 2
      %s26 = sadd.s32 1, %s21
      %p27 = scmp.ge.s32.totalorder %s26, 1
      %s28 = scalar_select %p27, 0, %s26
      %s29 = sadd.s32 1, %s20
      %s30 = scalar_select %p27, %s29, %s20
      %p31 = scmp.ge.s32.totalorder %s30, 2
      %s32 = scalar_select %p31, 0, %s30
      %s33 = ssub.s32 %s20, %s32
      %p34 = scmp.eq.s32.totalorder %s33, 0
      %s36 = sadd.s32 %s35, 1
      %s37 = scalar_select %p34, %s35, %s36
      %p40 = pneg %p34
      %p41 = scmp.eq.s32.totalorder %s13, 1
      %p42 = por %p40, %p41
      %p43 = scmp.ne.s32.totalorder %s35, %s38
      %p44 = scmp.eq.s32.totalorder %s13, 0
      %p45 = por %p43, %p44
      %p46 = scmp.ne.s32.totalorder %s35, %s38
      %p47 = scmp.eq.s32.totalorder %s18, 1
      %p48 = por %p46, %p47
      %p49 = scmp.ne.s32.totalorder %s38, %s39
      %p50 = scmp.eq.s32.totalorder %s18, 0
      %p51 = por %p49, %p50
      %p52 = scmp.ne.s32.totalorder %s38, %s39
      %p53 = scmp.eq.s32.totalorder %s19, 1
      %p54 = por %p52, %p53
      %p56 = scmp.ne.s32.totalorder %s39, %s55
      %p57 = scmp.eq.s32.totalorder %s19, 0
      %p58 = por %p56, %p57
      %s60 = sadd.s32 %s59, 1
      %p63 = scmp.eq.s32.totalorder %s13, 1
      %p64 = scmp.ne.s32.totalorder %s59, %s61
      %p65 = scmp.eq.s32.totalorder %s13, 0
      %p66 = por %p64, %p65
      %p67 = scmp.ne.s32.totalorder %s59, %s61
      %p68 = scmp.eq.s32.totalorder %s18, 1
      %p69 = por %p67, %p68
      %p70 = scmp.ne.s32.totalorder %s61, %s62
      %p71 = scmp.eq.s32.totalorder %s18, 0
      %p72 = por %p70, %p71
      %p73 = scmp.ne.s32.totalorder %s61, %s62
      %p74 = scmp.eq.s32.totalorder %s19, 1
      %p75 = por %p73, %p74
      %p77 = scmp.ne.s32.totalorder %s62, %s76
      %p78 = scmp.eq.s32.totalorder %s19, 0
      %p79 = por %p77, %p78
      %s80 = ssub.s32 %s21, %s28
      %p81 = scmp.eq.s32.totalorder %s80, 0
      %s83 = sadd.s32 %s82, 1
      %s84 = scalar_select %p81, %s82, %s83
      %p87 = pneg %p81
      %p88 = scmp.eq.s32.totalorder %s13, 1
      %p89 = por %p87, %p88
      %p90 = scmp.ne.s32.totalorder %s82, %s85
      %p91 = scmp.eq.s32.totalorder %s13, 0
      %p92 = por %p90, %p91
      %p93 = scmp.ne.s32.totalorder %s82, %s85
      %p94 = scmp.eq.s32.totalorder %s18, 1
      %p95 = por %p93, %p94
      %p96 = scmp.ne.s32.totalorder %s85, %s86
      %p97 = scmp.eq.s32.totalorder %s18, 0
      %p98 = por %p96, %p97
      %p99 = scmp.ne.s32.totalorder %s85, %s86
      %p100 = scmp.eq.s32.totalorder %s19, 1
      %p101 = por %p99, %p100
      %p103 = scmp.ne.s32.totalorder %s86, %s102
      %p104 = scmp.eq.s32.totalorder %s19, 0
      %p105 = por %p103, %p104
      %s106 = ssub.s32 %s21, %s28
      %p107 = scmp.eq.s32.totalorder %s106, 0
      %s109 = sadd.s32 %s108, 1
      %s110 = scalar_select %p107, %s108, %s109
      %p113 = pneg %p107
      %p114 = scmp.eq.s32.totalorder %s13, 1
      %p115 = por %p113, %p114
      %p116 = scmp.ne.s32.totalorder %s108, %s111
      %p117 = scmp.eq.s32.totalorder %s13, 0
      %p118 = por %p116, %p117
      %p119 = scmp.ne.s32.totalorder %s108, %s111
      %p120 = scmp.eq.s32.totalorder %s18, 1
      %p121 = por %p119, %p120
      %p122 = scmp.ne.s32.totalorder %s111, %s112
      %p123 = scmp.eq.s32.totalorder %s18, 0
      %p124 = por %p122, %p123
      %p125 = scmp.ne.s32.totalorder %s111, %s112
      %p126 = scmp.eq.s32.totalorder %s19, 1
      %p127 = por %p125, %p126
      %p129 = scmp.ne.s32.totalorder %s112, %s128
      %p130 = scmp.eq.s32.totalorder %s19, 0
      %p131 = por %p129, %p130
      %s132 = ssub.s32 %s20, %s32
      %s133 = ssub.s32 %s21, %s28
      %s134 = sor.u32 %s132, %s133
      %p135 = scmp.eq.s32.totalorder %s134, 0
      %s137 = sadd.s32 %s136, 1
      %s138 = scalar_select %p135, %s136, %s137
      %p141 = pneg %p135
      %p142 = scmp.eq.s32.totalorder %s13, 1
      %p143 = por %p141, %p142
      %p144 = scmp.ne.s32.totalorder %s136, %s139
      %p145 = scmp.eq.s32.totalorder %s13, 0
      %p146 = por %p144, %p145
      %p147 = scmp.ne.s32.totalorder %s136, %s139
      %p148 = scmp.eq.s32.totalorder %s18, 1
      %p149 = por %p147, %p148
      %p150 = scmp.ne.s32.totalorder %s139, %s140
      %p151 = scmp.eq.s32.totalorder %s18, 0
      %p152 = por %p150, %p151
      %p153 = scmp.ne.s32.totalorder %s139, %s140
      %p154 = scmp.eq.s32.totalorder %s19, 1
      %p155 = por %p153, %p154
      %p157 = scmp.ne.s32.totalorder %s140, %s156
      %p158 = scmp.eq.s32.totalorder %s19, 0
      %p159 = por %p157, %p158
      %p160 = scmp.le.s32.totalorder 1, %s13
      %p161 = scmp.lt.s32.totalorder %s13, 3
      %p162 = pnand %p160, %p161
      %p163 = pneg %p162
      // Predicated region
      $region9: #{llm_forward.5} parent=5 // pred_check
        _
      $region10: #{llm_forward.5} parent=5 // pred_check_branch
        %165 = sbr.rel (%p162) target = $region12
      $region11: #{llm_forward.5} parent=5 // pred_region
        %s166 = ssub.s32 %s13, 1
        // Predicated region
        $region13: #{llm_forward.5} parent=11 // pred_check
          %p167 = pneg %p72
        $region14: #{llm_forward.5} parent=11 // pred_check_branch
          %169 = sbr.rel (%p167) target = $region16
        $region15: #{llm_forward.5} parent=11 // pred_region
          _
        $region16: #{llm_forward.5} parent=11 // pred_fallthru
          _
        // Predicated region
        $region17: #{llm_forward.5} parent=11 // pred_check
          %p170 = pneg %p98
        $region18: #{llm_forward.5} parent=11 // pred_check_branch
          %172 = sbr.rel (%p170) target = $region20
        $region19: #{llm_forward.5} parent=11 // pred_region
          %p173 = scmp.lt.s32.totalorder %s23, 0
          %s174 = scalar_select %p173, %s23, 0
          %s175 = smul.addr %s174, 4
          %s176 = scalar_lea.vmem %s2, %s175
        $region20: #{llm_forward.5} parent=11 // pred_fallthru
          _
        // Predicated region
        $region21: #{llm_forward.5} parent=11 // pred_check
          %p177 = pneg %p124
        $region22: #{llm_forward.5} parent=11 // pred_check_branch
          %179 = sbr.rel (%p177) target = $region24
        $region23: #{llm_forward.5} parent=11 // pred_region
          %p180 = scmp.lt.s32.totalorder %s23, 0
          %s181 = scalar_select %p180, %s23, 0
          %s182 = scalar_lea.vmem %s3, %s181
        $region24: #{llm_forward.5} parent=11 // pred_fallthru
          _
      $region12: #{llm_forward.5} parent=5 // pred_fallthru
        _
      %p183 = scmp.lt.s32.totalorder %s13, 2
      // Predicated region
      $region25: #{llm_forward.5} parent=5 // pred_check
        %p184 = pneg %p183
      $region26: #{llm_forward.5} parent=5 // pred_check_branch
        %186 = sbr.rel (%p184) target = $region28
      $region27: #{llm_forward.5} parent=5 // pred_region
        // Predicated region
        $region29: #{llm_forward.5} parent=27 // pred_check
          %p187 = pneg %p45
        $region30: #{llm_forward.5} parent=27 // pred_check_branch
          %189 = sbr.rel (%p187) target = $region32
        $region31: #{llm_forward.5} parent=27 // pred_region
          %p190 = scmp.lt.s32.totalorder %s20, 1
          %s191 = scalar_select %p190, %s20, 1
          %s192 = smul.addr %s191, 8
          %s193 = scalar_lea.vmem %s0, %s192
        $region32: #{llm_forward.5} parent=27 // pred_fallthru
          _
      $region28: #{llm_forward.5} parent=5 // pred_fallthru
        _
      %p194 = scmp.le.s32.totalorder 1, %s13
      %p195 = scmp.lt.s32.totalorder %s13, 3
      %p196 = pnand %p194, %p195
      %p197 = pneg %p196
      // Predicated region
      $region33: #{llm_forward.5} parent=5 // pred_check
        _
      $region34: #{llm_forward.5} parent=5 // pred_check_branch
        %199 = sbr.rel (%p196) target = $region36
      $region35: #{llm_forward.5} parent=5 // pred_region
        %s200 = ssub.s32 %s13, 1
        %p201 = scmp.lt.s32.totalorder %s22, 1
        %s202 = scalar_select %p201, %s22, 1
        %s203 = smul.addr %s202, 8
        %s204 = scalar_lea.vmem %s0, %s203
        %p205 = pneg %p51
        %p206 = pneg %p48
        %p207 = pneg %p72
        %p208 = pneg %p69
        %p209 = scmp.lt.s32.totalorder %s23, 0
        %s210 = scalar_select %p209, %s23, 0
        %s211 = smul.addr %s210, 4
        %s212 = scalar_lea.vmem %s2, %s211
        %p213 = pneg %p98
        %p214 = pneg %p95
        %p215 = scmp.lt.s32.totalorder %s23, 0
        %s216 = scalar_select %p215, %s23, 0
        %s217 = scalar_lea.vmem %s3, %s216
        %p218 = pneg %p124
        %p219 = pneg %p121
        %p220 = pneg %p152
        %p221 = pneg %p149
        %s222 = sand.u32 %s139, 1
        %s223 = scalar_lea.sflag [#allocation3], %s222
        %s224 = sand.u32 %s139, 1
        %s225 = smul.addr %s224, 8
        %s226 = scalar_lea.vmem [#allocation2], %s225
        %p227 = scmp.lt.s32.totalorder %s22, 1
        %s228 = scalar_select %p227, %s22, 1
        %s229 = smul.addr %s228, 8
        %s230 = scalar_lea.vmem %s0, %s229
        %p231 = scmp.lt.s32.totalorder %s23, 0
        %s232 = scalar_select %p231, %s23, 0
        %s233 = smul.addr %s232, 4
        %s234 = scalar_lea.vmem %s2, %s233
        %p235 = scmp.lt.s32.totalorder %s23, 0
        %s236 = scalar_select %p235, %s23, 0
        %s237 = scalar_lea.vmem %s3, %s236
        %v239 = vld [vmem:[%s230] sm:$0xff]
        %v240 = vld [vmem:[%s1] sm:$0x1]
        %v241 = vmul.f32 %v239, %v239
        %vm242 = vcmask 261120
        %v243 = vsel %vm242, %v241, 0.0
        %244 = vadd.xlane.f32.xlu0 %v243
        %v245 = vpop.xlane.xlu0 %244
        %v246 = vrcp.pop 32.0
        %v247 = vmul.f32 %v245, %v246
        %v248 = vadd.f32 %v247, 1e-06
        %v249 = vrsqrt.pop %v248
        %v250 = vmul.f32 %v239, %v249
        %v252 = vlaneseq
        %v253 = vshrl.u32 %v252, 7
        %v254 = vsub.s32 0, %v253
        %v255 = vrot.slane %v240, %v254
        %v257 = vmul.f32 %v250, %v255
        %v258 = vpack.c.bf16 %v257, %v257
        %v259 = vld [vmem:[%s234] sm:$0xf]
        %v260 = vld [vmem:[%s234 + $0x4] sm:$0xf]
        %v261 = vld [vmem:[%s234 + $0x8] sm:$0xf]
        %v262 = vld [vmem:[%s234 + $0xc] sm:$0xf]
        %v263 = vld [vmem:[%s237] sm:$0x1]
        %v265 = vlaneseq
        %v266 = vshrl.u32 %v265, 7
        %v267 = vsub.s32 0, %v266
        %v268 = vrot.slane %v263, %v267
        %v274 = vunpack.c.l.b16 %v259
        %v275 = vunpack.c.l.b16 %v260
        %v276 = vunpack.c.l.b16 %v261
        %v277 = vunpack.c.l.b16 %v262
        %v278 = vpack.c.b16 %v275, %v274
        %v279 = vpack.c.b16 %v277, %v276
        %v283 = vsel %vm242, %v258, 0
        %285 = vmatprep.subr.bf16.mxu0 0
        %286 = vmatpush1.bf16.msra.mxu0 0
        %287 = vmatprep.subr.bf16.mxu0 0
        %288 = vmatpush1.bf16.msra.mxu0 0
        %289 = vmatprep.subr.bf16.mxu0 0
        %290 = vmatpush1.bf16.msra.mxu0 0
        %291 = vmatprep.subr.bf16.mxu0 0
        %292 = vmatpush1.bf16.msra.mxu0 0
        %293 = vmatprep.subr.bf16.mxu0 0
        %294 = vmatpush1.bf16.msra.mxu0 0
        %295 = vmatprep.subr.bf16.mxu0 0
        %296 = vmatpush1.bf16.msra.mxu0 0
        %297 = vmatprep.subr.bf16.mxu0 0
        %298 = vmatpush1.bf16.msra.mxu0 %v279
        %299 = vmatprep.subr.bf16.mxu0 0
        %300 = vmatpush1.bf16.msra.mxu0 %v278
        %301 = vmatprep.subr.bf16.mxu0 0
        %302 = vmatpush2.bf16.msra.mxu0 0
        %303 = vmatprep.subr.bf16.mxu0 0
        %304 = vmatpush2.bf16.msra.mxu0 0
        %305 = vmatprep.subr.bf16.mxu0 0
        %306 = vmatpush2.bf16.msra.mxu0 0
        %307 = vmatprep.subr.bf16.mxu0 0
        %308 = vmatpush2.bf16.msra.mxu0 0
        %309 = vmatprep.subr.bf16.mxu0 0
        %310 = vmatpush2.bf16.msra.mxu0 0
        %311 = vmatprep.subr.bf16.mxu0 0
        %312 = vmatpush2.bf16.msra.mxu0 0
        %313 = vmatprep.subr.bf16.mxu0 0
        %314 = vmatpush2.bf16.msra.mxu0 0
        %315 = vmatprep.subr.bf16.mxu0 0
        %316 = vmatpush2.bf16.msra.mxu0 0
        %317 = vmatprep.mubr.bf16.mxu0 0
        %318 = vmatmul.mubr.bf16.gmra.mxu0 %v283
        %v319 = vpop.f32.mrf.mxu0
        %v320 = vadd.f32 %v268, %v319
        %v321 = vpop.f32.mrf.mxu0
        %v322 = vpop.f32.mrf.mxu0
        %v323 = vpop.f32.mrf.mxu0
        %324 = vdwg.mxu0
        %vm325 = vcmask 523264
        %326 = vst.msk [vmem:[%s226] sm:$0xff] %vm325, %v320
        %s327 = sand.u32 %s139, 1
        %s328 = scalar_lea.sflag [#allocation3], %s327
        %s329 = sand.u32 %s139, 1
        %s330 = smul.addr %s329, 8
        %s331 = scalar_lea.vmem [#allocation2], %s330
        // Predicated region
        $region37: #{llm_forward.5} parent=35 // pred_check
          %p332 = pneg %p149
        $region38: #{llm_forward.5} parent=35 // pred_check_branch
          %334 = sbr.rel (%p332) target = $region40
        $region39: #{llm_forward.5} parent=35 // pred_region
          %s336 = ssub.s32 128, 128
          %337 = vsyncadd %s328, %s336
          %s338 = sadd.s32 %s23, %s22
          %s339 = smul.addr %s338, 128
          %s340 = scalar_lea.hbm %s4, %s339
          %s342 = sshll.u32 %s331, 4
          %s343 = int_to_ptr.vmem [resolvable:$true] %s342
          %345 = dma.vmem_to_hbm [thread:$0]  %s343, 128, %s340, %s328
        $region40: #{llm_forward.5} parent=35 // pred_fallthru
          _
      $region36: #{llm_forward.5} parent=5 // pred_fallthru
        _
      %p346 = scmp.le.s32.totalorder 2, %s13
      // Predicated region
      $region41: #{llm_forward.5} parent=5 // pred_check
        %p347 = pneg %p346
      $region42: #{llm_forward.5} parent=5 // pred_check_branch
        %349 = sbr.rel (%p347) target = $region44
      $region43: #{llm_forward.5} parent=5 // pred_region
        %s350 = ssub.s32 %s13, 2
        // Predicated region
        $region45: #{llm_forward.5} parent=43 // pred_check
          %p351 = pneg %p155
        $region46: #{llm_forward.5} parent=43 // pred_check_branch
          %353 = sbr.rel (%p351) target = $region48
        $region47: #{llm_forward.5} parent=43 // pred_region
          %s354 = sand.u32 %s140, 1
          %s355 = scalar_lea.sflag [#allocation3], %s354
          %s356 = sand.u32 %s140, 1
          %s357 = smul.addr %s356, 8
          %s358 = scalar_lea.vmem [#allocation2], %s357
          %359 = dma.done %s355, 128
        $region48: #{llm_forward.5} parent=43 // pred_fallthru
          _
      $region44: #{llm_forward.5} parent=5 // pred_fallthru
        _
    $region6: #{llm_forward.5} parent=1 // loop_footer
      %s17 = sadd.s32 1, %s13
    $region7: #{llm_forward.5} parent=1 // loop_footer_branch
      %12 = sbr.rel target = $region3
    $region8: #{llm_forward.5} parent=1 // loop_exit
      _
    %360 = vsyncpa [#allocation3], 1
    %s361 = scalar_lea.sflag [#allocation3], 1
    %362 = vsyncpa %s361, 1

// kernel: llm_forward.3
$region0: #{llm_forward.3}
  #allocation0 [shape = 'u32[]', space=smem, size = 0x4, offset = 0x4, fixed_abs, tag = 'smem constant byte address 0x4 - core index']
  #allocation1 [shape = 'u32[144,128]{1,0:T(1,128)}', space=vmem, size = 0x12000, scoped, tag = 'internal scratch']
  #allocation2 [shape = 'f32[8,32]{1,0:T(8,128)}', space=vmem, size = 0x1000, scoped, tag = 'scratch operand']
  %s0 = inlined_call_operand.vmem [shape: f32[2,8,32], index: 0, kind: input, shape index: {}]
  %s1 = inlined_call_operand.vmem [shape: f32[1,32], index: 1, kind: input, shape index: {}]
  %s2 = inlined_call_operand.vmem [shape: bf16[32,32], index: 2, kind: input, shape index: {}]
  %s3 = inlined_call_operand.vmem [shape: bf16[32,32], index: 3, kind: input, shape index: {}]
  %s4 = inlined_call_operand.vmem [shape: bf16[32,32], index: 4, kind: input, shape index: {}]
  %s5 = inlined_call_operand.vmem [shape: bf16[32,32], index: 5, kind: input, shape index: {}]
  %s6 = inlined_call_operand.vmem [shape: f32[8,4], index: 6, kind: input, shape index: {}]
  %s7 = inlined_call_operand.vmem [shape: f32[8,4], index: 7, kind: input, shape index: {}]
  %s8 = inlined_call_operand.vmem [shape: f32[1,32], index: 8, kind: input, shape index: {}]
  %s9 = inlined_call_operand.vmem [shape: bf16[32,128], index: 9, kind: input, shape index: {}]
  %s10 = inlined_call_operand.vmem [shape: f32[1,128], index: 10, kind: input, shape index: {}]
  %s11 = inlined_call_operand.vmem [shape: bf16[32,128], index: 11, kind: input, shape index: {}]
  %s12 = inlined_call_operand.vmem [shape: f32[1,128], index: 12, kind: input, shape index: {}]
  %s13 = inlined_call_operand.vmem [shape: bf16[128,32], index: 13, kind: input, shape index: {}]
  %s14 = inlined_call_operand.vmem [shape: f32[1,32], index: 14, kind: input, shape index: {}]
  %s15 = inlined_call_operand.vmem [shape: f32[2,8,32], index: 15, kind: output, shape index: {}]
  %s16 = sld [smem:[#allocation0]]
  $region93: #{llm_forward.3} parent=0
    _
  %s18 = ssub.s32 1, %s16
  %s19 = scalar_select 0, %s18, %s16
  loop: start=0, step=1, limit=4
  $region2: #{llm_forward.3} parent=0 // loop_pre_header
    _
  $region3: #{llm_forward.3} parent=0 // loop_header
    %s21 = sphi 0, %s25
    %p22 = scmp.ge.s32.totalorder %s21, 4
    %s31 = sphi 0, %s33
    %s34 = sphi 0, %s31
    %s35 = sphi 0, %s34
    %s51 = sphi 0, %s35
    %s55 = sphi 0, %s55
    %s57 = sphi 0, %s55
    %s58 = sphi 0, %s57
    %s72 = sphi 0, %s58
    %s76 = sphi 0, %s76
    %s78 = sphi 0, %s76
    %s79 = sphi 0, %s78
    %s93 = sphi 0, %s79
    %s97 = sphi 0, %s97
    %s99 = sphi 0, %s97
    %s100 = sphi 0, %s99
    %s114 = sphi 0, %s100
    %s118 = sphi 0, %s118
    %s120 = sphi 0, %s118
    %s121 = sphi 0, %s120
    %s135 = sphi 0, %s121
    %s139 = sphi 0, %s139
    %s141 = sphi 0, %s139
    %s142 = sphi 0, %s141
    %s156 = sphi 0, %s142
    %s160 = sphi 0, %s160
    %s162 = sphi 0, %s160
    %s163 = sphi 0, %s162
    %s177 = sphi 0, %s163
    %s181 = sphi 0, %s181
    %s183 = sphi 0, %s181
    %s184 = sphi 0, %s183
    %s198 = sphi 0, %s184
    %s202 = sphi 0, %s202
    %s204 = sphi 0, %s202
    %s205 = sphi 0, %s204
    %s219 = sphi 0, %s205
    %s223 = sphi 0, %s223
    %s225 = sphi 0, %s223
    %s226 = sphi 0, %s225
    %s240 = sphi 0, %s226
    %s244 = sphi 0, %s244
    %s246 = sphi 0, %s244
    %s247 = sphi 0, %s246
    %s261 = sphi 0, %s247
    %s265 = sphi 0, %s265
    %s267 = sphi 0, %s265
    %s268 = sphi 0, %s267
    %s282 = sphi 0, %s268
    %s286 = sphi 0, %s286
    %s288 = sphi 0, %s286
    %s289 = sphi 0, %s288
    %s303 = sphi 0, %s289
    %s307 = sphi 0, %s307
    %s309 = sphi 0, %s307
    %s310 = sphi 0, %s309
    %s324 = sphi 0, %s310
    %s328 = sphi 0, %s328
    %s330 = sphi 0, %s328
    %s331 = sphi 0, %s330
    %s345 = sphi 0, %s331
    %s351 = sphi 0, %s353
    %s354 = sphi 0, %s351
    %s355 = sphi 0, %s354
    %s371 = sphi 0, %s355
  $region4: #{llm_forward.3} parent=0 // loop_header_branch
    %24 = sbr.rel (%p22) target = $region8
  $region5: #{llm_forward.3} parent=0 // loop_body
    %s26 = ssub.s32 %s21, 1
    %s27 = ssub.s32 %s21, 2
    %s28 = sadd.s32 %s21, 1
    %s29 = ssub.s32 %s21, %s28
    %p30 = scmp.eq.s32.totalorder %s29, 0
    %s32 = sadd.s32 %s31, 1
    %s33 = scalar_select %p30, %s31, %s32
    %p36 = pneg %p30
    %p37 = scmp.eq.s32.totalorder %s21, 1
    %p38 = por %p36, %p37
    %p39 = scmp.ne.s32.totalorder %s31, %s34
    %p40 = scmp.eq.s32.totalorder %s21, 0
    %p41 = por %p39, %p40
    %p42 = scmp.ne.s32.totalorder %s31, %s34
    %p43 = scmp.eq.s32.totalorder %s26, 1
    %p44 = por %p42, %p43
    %p45 = scmp.ne.s32.totalorder %s34, %s35
    %p46 = scmp.eq.s32.totalorder %s26, 0
    %p47 = por %p45, %p46
    %p48 = scmp.ne.s32.totalorder %s34, %s35
    %p49 = scmp.eq.s32.totalorder %s27, 1
    %p50 = por %p48, %p49
    %p52 = scmp.ne.s32.totalorder %s35, %s51
    %p53 = scmp.eq.s32.totalorder %s27, 0
    %p54 = por %p52, %p53
    %s56 = sadd.s32 %s55, 1
    %p59 = scmp.eq.s32.totalorder %s21, 1
    %p60 = scmp.ne.s32.totalorder %s55, %s57
    %p61 = scmp.eq.s32.totalorder %s21, 0
    %p62 = por %p60, %p61
    %p63 = scmp.ne.s32.totalorder %s55, %s57
    %p64 = scmp.eq.s32.totalorder %s26, 1
    %p65 = por %p63, %p64
    %p66 = scmp.ne.s32.totalorder %s57, %s58
    %p67 = scmp.eq.s32.totalorder %s26, 0
    %p68 = por %p66, %p67
    %p69 = scmp.ne.s32.totalorder %s57, %s58
    %p70 = scmp.eq.s32.totalorder %s27, 1
    %p71 = por %p69, %p70
    %p73 = scmp.ne.s32.totalorder %s58, %s72
    %p74 = scmp.eq.s32.totalorder %s27, 0
    %p75 = por %p73, %p74
    %s77 = sadd.s32 %s76, 1
    %p80 = scmp.eq.s32.totalorder %s21, 1
    %p81 = scmp.ne.s32.totalorder %s76, %s78
    %p82 = scmp.eq.s32.totalorder %s21, 0
    %p83 = por %p81, %p82
    %p84 = scmp.ne.s32.totalorder %s76, %s78
    %p85 = scmp.eq.s32.totalorder %s26, 1
    %p86 = por %p84, %p85
    %p87 = scmp.ne.s32.totalorder %s78, %s79
    %p88 = scmp.eq.s32.totalorder %s26, 0
    %p89 = por %p87, %p88
    %p90 = scmp.ne.s32.totalorder %s78, %s79
    %p91 = scmp.eq.s32.totalorder %s27, 1
    %p92 = por %p90, %p91
    %p94 = scmp.ne.s32.totalorder %s79, %s93
    %p95 = scmp.eq.s32.totalorder %s27, 0
    %p96 = por %p94, %p95
    %s98 = sadd.s32 %s97, 1
    %p101 = scmp.eq.s32.totalorder %s21, 1
    %p102 = scmp.ne.s32.totalorder %s97, %s99
    %p103 = scmp.eq.s32.totalorder %s21, 0
    %p104 = por %p102, %p103
    %p105 = scmp.ne.s32.totalorder %s97, %s99
    %p106 = scmp.eq.s32.totalorder %s26, 1
    %p107 = por %p105, %p106
    %p108 = scmp.ne.s32.totalorder %s99, %s100
    %p109 = scmp.eq.s32.totalorder %s26, 0
    %p110 = por %p108, %p109
    %p111 = scmp.ne.s32.totalorder %s99, %s100
    %p112 = scmp.eq.s32.totalorder %s27, 1
    %p113 = por %p111, %p112
    %p115 = scmp.ne.s32.totalorder %s100, %s114
    %p116 = scmp.eq.s32.totalorder %s27, 0
    %p117 = por %p115, %p116
    %s119 = sadd.s32 %s118, 1
    %p122 = scmp.eq.s32.totalorder %s21, 1
    %p123 = scmp.ne.s32.totalorder %s118, %s120
    %p124 = scmp.eq.s32.totalorder %s21, 0
    %p125 = por %p123, %p124
    %p126 = scmp.ne.s32.totalorder %s118, %s120
    %p127 = scmp.eq.s32.totalorder %s26, 1
    %p128 = por %p126, %p127
    %p129 = scmp.ne.s32.totalorder %s120, %s121
    %p130 = scmp.eq.s32.totalorder %s26, 0
    %p131 = por %p129, %p130
    %p132 = scmp.ne.s32.totalorder %s120, %s121
    %p133 = scmp.eq.s32.totalorder %s27, 1
    %p134 = por %p132, %p133
    %p136 = scmp.ne.s32.totalorder %s121, %s135
    %p137 = scmp.eq.s32.totalorder %s27, 0
    %p138 = por %p136, %p137
    %s140 = sadd.s32 %s139, 1
    %p143 = scmp.eq.s32.totalorder %s21, 1
    %p144 = scmp.ne.s32.totalorder %s139, %s141
    %p145 = scmp.eq.s32.totalorder %s21, 0
    %p146 = por %p144, %p145
    %p147 = scmp.ne.s32.totalorder %s139, %s141
    %p148 = scmp.eq.s32.totalorder %s26, 1
    %p149 = por %p147, %p148
    %p150 = scmp.ne.s32.totalorder %s141, %s142
    %p151 = scmp.eq.s32.totalorder %s26, 0
    %p152 = por %p150, %p151
    %p153 = scmp.ne.s32.totalorder %s141, %s142
    %p154 = scmp.eq.s32.totalorder %s27, 1
    %p155 = por %p153, %p154
    %p157 = scmp.ne.s32.totalorder %s142, %s156
    %p158 = scmp.eq.s32.totalorder %s27, 0
    %p159 = por %p157, %p158
    %s161 = sadd.s32 %s160, 1
    %p164 = scmp.eq.s32.totalorder %s21, 1
    %p165 = scmp.ne.s32.totalorder %s160, %s162
    %p166 = scmp.eq.s32.totalorder %s21, 0
    %p167 = por %p165, %p166
    %p168 = scmp.ne.s32.totalorder %s160, %s162
    %p169 = scmp.eq.s32.totalorder %s26, 1
    %p170 = por %p168, %p169
    %p171 = scmp.ne.s32.totalorder %s162, %s163
    %p172 = scmp.eq.s32.totalorder %s26, 0
    %p173 = por %p171, %p172
    %p174 = scmp.ne.s32.totalorder %s162, %s163
    %p175 = scmp.eq.s32.totalorder %s27, 1
    %p176 = por %p174, %p175
    %p178 = scmp.ne.s32.totalorder %s163, %s177
    %p179 = scmp.eq.s32.totalorder %s27, 0
    %p180 = por %p178, %p179
    %s182 = sadd.s32 %s181, 1
    %p185 = scmp.eq.s32.totalorder %s21, 1
    %p186 = scmp.ne.s32.totalorder %s181, %s183
    %p187 = scmp.eq.s32.totalorder %s21, 0
    %p188 = por %p186, %p187
    %p189 = scmp.ne.s32.totalorder %s181, %s183
    %p190 = scmp.eq.s32.totalorder %s26, 1
    %p191 = por %p189, %p190
    %p192 = scmp.ne.s32.totalorder %s183, %s184
    %p193 = scmp.eq.s32.totalorder %s26, 0
    %p194 = por %p192, %p193
    %p195 = scmp.ne.s32.totalorder %s183, %s184
    %p196 = scmp.eq.s32.totalorder %s27, 1
    %p197 = por %p195, %p196
    %p199 = scmp.ne.s32.totalorder %s184, %s198
    %p200 = scmp.eq.s32.totalorder %s27, 0
    %p201 = por %p199, %p200
    %s203 = sadd.s32 %s202, 1
    %p206 = scmp.eq.s32.totalorder %s21, 1
    %p207 = scmp.ne.s32.totalorder %s202, %s204
    %p208 = scmp.eq.s32.totalorder %s21, 0
    %p209 = por %p207, %p208
    %p210 = scmp.ne.s32.totalorder %s202, %s204
    %p211 = scmp.eq.s32.totalorder %s26, 1
    %p212 = por %p210, %p211
    %p213 = scmp.ne.s32.totalorder %s204, %s205
    %p214 = scmp.eq.s32.totalorder %s26, 0
    %p215 = por %p213, %p214
    %p216 = scmp.ne.s32.totalorder %s204, %s205
    %p217 = scmp.eq.s32.totalorder %s27, 1
    %p218 = por %p216, %p217
    %p220 = scmp.ne.s32.totalorder %s205, %s219
    %p221 = scmp.eq.s32.totalorder %s27, 0
    %p222 = por %p220, %p221
    %s224 = sadd.s32 %s223, 1
    %p227 = scmp.eq.s32.totalorder %s21, 1
    %p228 = scmp.ne.s32.totalorder %s223, %s225
    %p229 = scmp.eq.s32.totalorder %s21, 0
    %p230 = por %p228, %p229
    %p231 = scmp.ne.s32.totalorder %s223, %s225
    %p232 = scmp.eq.s32.totalorder %s26, 1
    %p233 = por %p231, %p232
    %p234 = scmp.ne.s32.totalorder %s225, %s226
    %p235 = scmp.eq.s32.totalorder %s26, 0
    %p236 = por %p234, %p235
    %p237 = scmp.ne.s32.totalorder %s225, %s226
    %p238 = scmp.eq.s32.totalorder %s27, 1
    %p239 = por %p237, %p238
    %p241 = scmp.ne.s32.totalorder %s226, %s240
    %p242 = scmp.eq.s32.totalorder %s27, 0
    %p243 = por %p241, %p242
    %s245 = sadd.s32 %s244, 1
    %p248 = scmp.eq.s32.totalorder %s21, 1
    %p249 = scmp.ne.s32.totalorder %s244, %s246
    %p250 = scmp.eq.s32.totalorder %s21, 0
    %p251 = por %p249, %p250
    %p252 = scmp.ne.s32.totalorder %s244, %s246
    %p253 = scmp.eq.s32.totalorder %s26, 1
    %p254 = por %p252, %p253
    %p255 = scmp.ne.s32.totalorder %s246, %s247
    %p256 = scmp.eq.s32.totalorder %s26, 0
    %p257 = por %p255, %p256
    %p258 = scmp.ne.s32.totalorder %s246, %s247
    %p259 = scmp.eq.s32.totalorder %s27, 1
    %p260 = por %p258, %p259
    %p262 = scmp.ne.s32.totalorder %s247, %s261
    %p263 = scmp.eq.s32.totalorder %s27, 0
    %p264 = por %p262, %p263
    %s266 = sadd.s32 %s265, 1
    %p269 = scmp.eq.s32.totalorder %s21, 1
    %p270 = scmp.ne.s32.totalorder %s265, %s267
    %p271 = scmp.eq.s32.totalorder %s21, 0
    %p272 = por %p270, %p271
    %p273 = scmp.ne.s32.totalorder %s265, %s267
    %p274 = scmp.eq.s32.totalorder %s26, 1
    %p275 = por %p273, %p274
    %p276 = scmp.ne.s32.totalorder %s267, %s268
    %p277 = scmp.eq.s32.totalorder %s26, 0
    %p278 = por %p276, %p277
    %p279 = scmp.ne.s32.totalorder %s267, %s268
    %p280 = scmp.eq.s32.totalorder %s27, 1
    %p281 = por %p279, %p280
    %p283 = scmp.ne.s32.totalorder %s268, %s282
    %p284 = scmp.eq.s32.totalorder %s27, 0
    %p285 = por %p283, %p284
    %s287 = sadd.s32 %s286, 1
    %p290 = scmp.eq.s32.totalorder %s21, 1
    %p291 = scmp.ne.s32.totalorder %s286, %s288
    %p292 = scmp.eq.s32.totalorder %s21, 0
    %p293 = por %p291, %p292
    %p294 = scmp.ne.s32.totalorder %s286, %s288
    %p295 = scmp.eq.s32.totalorder %s26, 1
    %p296 = por %p294, %p295
    %p297 = scmp.ne.s32.totalorder %s288, %s289
    %p298 = scmp.eq.s32.totalorder %s26, 0
    %p299 = por %p297, %p298
    %p300 = scmp.ne.s32.totalorder %s288, %s289
    %p301 = scmp.eq.s32.totalorder %s27, 1
    %p302 = por %p300, %p301
    %p304 = scmp.ne.s32.totalorder %s289, %s303
    %p305 = scmp.eq.s32.totalorder %s27, 0
    %p306 = por %p304, %p305
    %s308 = sadd.s32 %s307, 1
    %p311 = scmp.eq.s32.totalorder %s21, 1
    %p312 = scmp.ne.s32.totalorder %s307, %s309
    %p313 = scmp.eq.s32.totalorder %s21, 0
    %p314 = por %p312, %p313
    %p315 = scmp.ne.s32.totalorder %s307, %s309
    %p316 = scmp.eq.s32.totalorder %s26, 1
    %p317 = por %p315, %p316
    %p318 = scmp.ne.s32.totalorder %s309, %s310
    %p319 = scmp.eq.s32.totalorder %s26, 0
    %p320 = por %p318, %p319
    %p321 = scmp.ne.s32.totalorder %s309, %s310
    %p322 = scmp.eq.s32.totalorder %s27, 1
    %p323 = por %p321, %p322
    %p325 = scmp.ne.s32.totalorder %s310, %s324
    %p326 = scmp.eq.s32.totalorder %s27, 0
    %p327 = por %p325, %p326
    %s329 = sadd.s32 %s328, 1
    %p332 = scmp.eq.s32.totalorder %s21, 1
    %p333 = scmp.ne.s32.totalorder %s328, %s330
    %p334 = scmp.eq.s32.totalorder %s21, 0
    %p335 = por %p333, %p334
    %p336 = scmp.ne.s32.totalorder %s328, %s330
    %p337 = scmp.eq.s32.totalorder %s26, 1
    %p338 = por %p336, %p337
    %p339 = scmp.ne.s32.totalorder %s330, %s331
    %p340 = scmp.eq.s32.totalorder %s26, 0
    %p341 = por %p339, %p340
    %p342 = scmp.ne.s32.totalorder %s330, %s331
    %p343 = scmp.eq.s32.totalorder %s27, 1
    %p344 = por %p342, %p343
    %p346 = scmp.ne.s32.totalorder %s331, %s345
    %p347 = scmp.eq.s32.totalorder %s27, 0
    %p348 = por %p346, %p347
    %s349 = ssub.s32 %s21, %s28
    %p350 = scmp.eq.s32.totalorder %s349, 0
    %s352 = sadd.s32 %s351, 1
    %s353 = scalar_select %p350, %s351, %s352
    %p356 = pneg %p350
    %p357 = scmp.eq.s32.totalorder %s21, 1
    %p358 = por %p356, %p357
    %p359 = scmp.ne.s32.totalorder %s351, %s354
    %p360 = scmp.eq.s32.totalorder %s21, 0
    %p361 = por %p359, %p360
    %p362 = scmp.ne.s32.totalorder %s351, %s354
    %p363 = scmp.eq.s32.totalorder %s26, 1
    %p364 = por %p362, %p363
    %p365 = scmp.ne.s32.totalorder %s354, %s355
    %p366 = scmp.eq.s32.totalorder %s26, 0
    %p367 = por %p365, %p366
    %p368 = scmp.ne.s32.totalorder %s354, %s355
    %p369 = scmp.eq.s32.totalorder %s27, 1
    %p370 = por %p368, %p369
    %p372 = scmp.ne.s32.totalorder %s355, %s371
    %p373 = scmp.eq.s32.totalorder %s27, 0
    %p374 = por %p372, %p373
    %p375 = scmp.le.s32.totalorder 1, %s21
    %p376 = scmp.lt.s32.totalorder %s21, 3
    %p377 = pnand %p375, %p376
    %p378 = pneg %p377
    // Predicated region
    $region9: #{llm_forward.3} parent=5 // pred_check
      _
    $region10: #{llm_forward.3} parent=5 // pred_check_branch
      %380 = sbr.rel (%p377) target = $region12
    $region11: #{llm_forward.3} parent=5 // pred_region
      %s381 = ssub.s32 %s21, 1
      // Predicated region
      $region13: #{llm_forward.3} parent=11 // pred_check
        %p382 = pneg %p68
      $region14: #{llm_forward.3} parent=11 // pred_check_branch
        %384 = sbr.rel (%p382) target = $region16
      $region15: #{llm_forward.3} parent=11 // pred_region
        _
      $region16: #{llm_forward.3} parent=11 // pred_fallthru
        _
      // Predicated region
      $region17: #{llm_forward.3} parent=11 // pred_check
        %p385 = pneg %p89
      $region18: #{llm_forward.3} parent=11 // pred_check_branch
        %387 = sbr.rel (%p385) target = $region20
      $region19: #{llm_forward.3} parent=11 // pred_region
        _
      $region20: #{llm_forward.3} parent=11 // pred_fallthru
        _
      // Predicated region
      $region21: #{llm_forward.3} parent=11 // pred_check
        %p388 = pneg %p110
      $region22: #{llm_forward.3} parent=11 // pred_check_branch
        %390 = sbr.rel (%p388) target = $region24
      $region23: #{llm_forward.3} parent=11 // pred_region
        _
      $region24: #{llm_forward.3} parent=11 // pred_fallthru
        _
      // Predicated region
      $region25: #{llm_forward.3} parent=11 // pred_check
        %p391 = pneg %p131
      $region26: #{llm_forward.3} parent=11 // pred_check_branch
        %393 = sbr.rel (%p391) target = $region28
      $region27: #{llm_forward.3} parent=11 // pred_region
        _
      $region28: #{llm_forward.3} parent=11 // pred_fallthru
        _
      // Predicated region
      $region29: #{llm_forward.3} parent=11 // pred_check
        %p394 = pneg %p152
      $region30: #{llm_forward.3} parent=11 // pred_check_branch
        %396 = sbr.rel (%p394) target = $region32
      $region31: #{llm_forward.3} parent=11 // pred_region
        _
      $region32: #{llm_forward.3} parent=11 // pred_fallthru
        _
      // Predicated region
      $region33: #{llm_forward.3} parent=11 // pred_check
        %p397 = pneg %p173
      $region34: #{llm_forward.3} parent=11 // pred_check_branch
        %399 = sbr.rel (%p397) target = $region36
      $region35: #{llm_forward.3} parent=11 // pred_region
        _
      $region36: #{llm_forward.3} parent=11 // pred_fallthru
        _
      // Predicated region
      $region37: #{llm_forward.3} parent=11 // pred_check
        %p400 = pneg %p194
      $region38: #{llm_forward.3} parent=11 // pred_check_branch
        %402 = sbr.rel (%p400) target = $region40
      $region39: #{llm_forward.3} parent=11 // pred_region
        _
      $region40: #{llm_forward.3} parent=11 // pred_fallthru
        _
      // Predicated region
      $region41: #{llm_forward.3} parent=11 // pred_check
        %p403 = pneg %p215
      $region42: #{llm_forward.3} parent=11 // pred_check_branch
        %405 = sbr.rel (%p403) target = $region44
      $region43: #{llm_forward.3} parent=11 // pred_region
        _
      $region44: #{llm_forward.3} parent=11 // pred_fallthru
        _
      // Predicated region
      $region45: #{llm_forward.3} parent=11 // pred_check
        %p406 = pneg %p236
      $region46: #{llm_forward.3} parent=11 // pred_check_branch
        %408 = sbr.rel (%p406) target = $region48
      $region47: #{llm_forward.3} parent=11 // pred_region
        _
      $region48: #{llm_forward.3} parent=11 // pred_fallthru
        _
      // Predicated region
      $region49: #{llm_forward.3} parent=11 // pred_check
        %p409 = pneg %p257
      $region50: #{llm_forward.3} parent=11 // pred_check_branch
        %411 = sbr.rel (%p409) target = $region52
      $region51: #{llm_forward.3} parent=11 // pred_region
        _
      $region52: #{llm_forward.3} parent=11 // pred_fallthru
        _
      // Predicated region
      $region53: #{llm_forward.3} parent=11 // pred_check
        %p412 = pneg %p278
      $region54: #{llm_forward.3} parent=11 // pred_check_branch
        %414 = sbr.rel (%p412) target = $region56
      $region55: #{llm_forward.3} parent=11 // pred_region
        _
      $region56: #{llm_forward.3} parent=11 // pred_fallthru
        _
      // Predicated region
      $region57: #{llm_forward.3} parent=11 // pred_check
        %p415 = pneg %p299
      $region58: #{llm_forward.3} parent=11 // pred_check_branch
        %417 = sbr.rel (%p415) target = $region60
      $region59: #{llm_forward.3} parent=11 // pred_region
        _
      $region60: #{llm_forward.3} parent=11 // pred_fallthru
        _
      // Predicated region
      $region61: #{llm_forward.3} parent=11 // pred_check
        %p418 = pneg %p320
      $region62: #{llm_forward.3} parent=11 // pred_check_branch
        %420 = sbr.rel (%p418) target = $region64
      $region63: #{llm_forward.3} parent=11 // pred_region
        _
      $region64: #{llm_forward.3} parent=11 // pred_fallthru
        _
      // Predicated region
      $region65: #{llm_forward.3} parent=11 // pred_check
        %p421 = pneg %p341
      $region66: #{llm_forward.3} parent=11 // pred_check_branch
        %423 = sbr.rel (%p421) target = $region68
      $region67: #{llm_forward.3} parent=11 // pred_region
        _
      $region68: #{llm_forward.3} parent=11 // pred_fallthru
        _
    $region12: #{llm_forward.3} parent=5 // pred_fallthru
      _
    %p424 = scmp.lt.s32.totalorder %s21, 2
    // Predicated region
    $region69: #{llm_forward.3} parent=5 // pred_check
      %p425 = pneg %p424
    $region70: #{llm_forward.3} parent=5 // pred_check_branch
      %427 = sbr.rel (%p425) target = $region72
    $region71: #{llm_forward.3} parent=5 // pred_region
      // Predicated region
      $region73: #{llm_forward.3} parent=71 // pred_check
        %p428 = pneg %p41
      $region74: #{llm_forward.3} parent=71 // pred_check_branch
        %430 = sbr.rel (%p428) target = $region76
      $region75: #{llm_forward.3} parent=71 // pred_region
        %p431 = scmp.lt.s32.totalorder %s21, 1
        %s432 = scalar_select %p431, %s21, 1
        %s433 = smul.addr %s432, 8
        %s434 = scalar_lea.vmem %s0, %s433
      $region76: #{llm_forward.3} parent=71 // pred_fallthru
        _
    $region72: #{llm_forward.3} parent=5 // pred_fallthru
      _
    %p435 = scmp.le.s32.totalorder 1, %s21
    %p436 = scmp.lt.s32.totalorder %s21, 3
    %p437 = pnand %p435, %p436
    %p438 = pneg %p437
    // Predicated region
    $region77: #{llm_forward.3} parent=5 // pred_check
      _
    $region78: #{llm_forward.3} parent=5 // pred_check_branch
      %440 = sbr.rel (%p437) target = $region80
    $region79: #{llm_forward.3} parent=5 // pred_region
      %s441 = ssub.s32 %s21, 1
      %p442 = scmp.lt.s32.totalorder %s26, 1
      %s443 = scalar_select %p442, %s26, 1
      %s444 = smul.addr %s443, 8
      %s445 = scalar_lea.vmem %s0, %s444
      %p446 = pneg %p47
      %p447 = pneg %p44
      %p448 = pneg %p68
      %p449 = pneg %p65
      %p450 = pneg %p89
      %p451 = pneg %p86
      %p452 = pneg %p110
      %p453 = pneg %p107
      %p454 = pneg %p131
      %p455 = pneg %p128
      %p456 = pneg %p152
      %p457 = pneg %p149
      %p458 = pneg %p173
      %p459 = pneg %p170
      %p460 = pneg %p194
      %p461 = pneg %p191
      %p462 = pneg %p215
      %p463 = pneg %p212
      %p464 = pneg %p236
      %p465 = pneg %p233
      %p466 = pneg %p257
      %p467 = pneg %p254
      %p468 = pneg %p278
      %p469 = pneg %p275
      %p470 = pneg %p299
      %p471 = pneg %p296
      %p472 = pneg %p320
      %p473 = pneg %p317
      %p474 = pneg %p341
      %p475 = pneg %p338
      %p476 = pneg %p367
      %p477 = pneg %p364
      %p478 = scmp.lt.s32.totalorder %s26, 1
      %s479 = scalar_select %p478, %s26, 1
      %s480 = smul.addr %s479, 8
      %s481 = scalar_lea.vmem %s15, %s480
      %p482 = scmp.lt.s32.totalorder %s26, 1
      %s483 = scalar_select %p482, %s26, 1
      %s484 = smul.addr %s483, 8
      %s485 = scalar_lea.vmem %s0, %s484
      %p486 = scmp.lt.s32.totalorder %s26, 1
      %s487 = scalar_select %p486, %s26, 1
      %s488 = smul.addr %s487, 8
      %s489 = scalar_lea.vmem %s15, %s488
      %v491 = vld [vmem:[%s485] sm:$0xff]
      %v492 = vld [vmem:[%s1] sm:$0x1]
      %v493 = vmul.f32 %v491, %v491
      %vm494 = vcmask 261120
      %v495 = vsel %vm494, %v493, 0.0
      %496 = vadd.xlane.f32.xlu0 %v495
      %v497 = vpop.xlane.xlu0 %496
      %v498 = vrcp.pop 32.0
      %v499 = vmul.f32 %v497, %v498
      %v500 = vadd.f32 %v499, 1e-06
      %v501 = vrsqrt.pop %v500
      %v502 = vmul.f32 %v491, %v501
      %v504 = vlaneseq
      %v505 = vshrl.u32 %v504, 7
      %v506 = vsub.s32 0, %v505
      %v507 = vrot.slane %v492, %v506
      %v509 = vmul.f32 %v502, %v507
      %v510 = vpack.c.bf16 %v509, %v509
      %v511 = vld [vmem:[%s2] sm:$0xf]
      %v512 = vld [vmem:[%s2 + $0x4] sm:$0xf]
      %v513 = vld [vmem:[%s2 + $0x8] sm:$0xf]
      %v514 = vld [vmem:[%s2 + $0xc] sm:$0xf]
      %v519 = vunpack.c.l.b16 %v511
      %v520 = vunpack.c.l.b16 %v512
      %v521 = vunpack.c.l.b16 %v513
      %v522 = vunpack.c.l.b16 %v514
      %v523 = vpack.c.b16 %v520, %v519
      %v524 = vpack.c.b16 %v522, %v521
      %v528 = vsel %vm494, %v510, 0
      %530 = vmatprep.subr.bf16.mxu0 0
      %531 = vmatpush1.bf16.msra.mxu0 0
      %532 = vmatprep.subr.bf16.mxu0 0
      %533 = vmatpush1.bf16.msra.mxu0 0
      %534 = vmatprep.subr.bf16.mxu0 0
      %535 = vmatpush1.bf16.msra.mxu0 0
      %536 = vmatprep.subr.bf16.mxu0 0
      %537 = vmatpush1.bf16.msra.mxu0 0
      %538 = vmatprep.subr.bf16.mxu0 0
      %539 = vmatpush1.bf16.msra.mxu0 0
      %540 = vmatprep.subr.bf16.mxu0 0
      %541 = vmatpush1.bf16.msra.mxu0 0
      %542 = vmatprep.subr.bf16.mxu0 0
      %543 = vmatpush1.bf16.msra.mxu0 %v524
      %544 = vmatprep.subr.bf16.mxu0 0
      %545 = vmatpush1.bf16.msra.mxu0 %v523
      %546 = vmatprep.subr.bf16.mxu0 0
      %547 = vmatpush2.bf16.msra.mxu0 0
      %548 = vmatprep.subr.bf16.mxu0 0
      %549 = vmatpush2.bf16.msra.mxu0 0
      %550 = vmatprep.subr.bf16.mxu0 0
      %551 = vmatpush2.bf16.msra.mxu0 0
      %552 = vmatprep.subr.bf16.mxu0 0
      %553 = vmatpush2.bf16.msra.mxu0 0
      %554 = vmatprep.subr.bf16.mxu0 0
      %555 = vmatpush2.bf16.msra.mxu0 0
      %556 = vmatprep.subr.bf16.mxu0 0
      %557 = vmatpush2.bf16.msra.mxu0 0
      %558 = vmatprep.subr.bf16.mxu0 0
      %559 = vmatpush2.bf16.msra.mxu0 0
      %560 = vmatprep.subr.bf16.mxu0 0
      %561 = vmatpush2.bf16.msra.mxu0 0
      %562 = vmatprep.mubr.bf16.mxu0 0
      %563 = vmatmul.mubr.bf16.gmra.mxu0 %v528
      %v564 = vpop.f32.mrf.mxu0
      %v565 = vadd.f32 0.0, %v564
      %v566 = vpop.f32.mrf.mxu0
      %v567 = vpop.f32.mrf.mxu0
      %v568 = vpop.f32.mrf.mxu0
      %569 = vdwg.mxu0
      %v570 = vmul.f32 %v565, 0.35355338
      %v571 = vld [vmem:[%s3] sm:$0xf]
      %v572 = vld [vmem:[%s3 + $0x4] sm:$0xf]
      %v573 = vld [vmem:[%s3 + $0x8] sm:$0xf]
      %v574 = vld [vmem:[%s3 + $0xc] sm:$0xf]
      %v579 = vunpack.c.l.b16 %v571
      %v580 = vunpack.c.l.b16 %v572
      %v581 = vunpack.c.l.b16 %v573
      %v582 = vunpack.c.l.b16 %v574
      %v583 = vpack.c.b16 %v580, %v579
      %v584 = vpack.c.b16 %v582, %v581
      %587 = vmatprep.subr.bf16.mxu0 0
      %588 = vmatpush1.bf16.msra.mxu0 0
      %589 = vmatprep.subr.bf16.mxu0 0
      %590 = vmatpush1.bf16.msra.mxu0 0
      %591 = vmatprep.subr.bf16.mxu0 0
      %592 = vmatpush1.bf16.msra.mxu0 0
      %593 = vmatprep.subr.bf16.mxu0 0
      %594 = vmatpush1.bf16.msra.mxu0 0
      %595 = vmatprep.subr.bf16.mxu0 0
      %596 = vmatpush1.bf16.msra.mxu0 0
      %597 = vmatprep.subr.bf16.mxu0 0
      %598 = vmatpush1.bf16.msra.mxu0 0
      %599 = vmatprep.subr.bf16.mxu0 0
      %600 = vmatpush1.bf16.msra.mxu0 %v584
      %601 = vmatprep.subr.bf16.mxu0 0
      %602 = vmatpush1.bf16.msra.mxu0 %v583
      %603 = vmatprep.subr.bf16.mxu0 0
      %604 = vmatpush2.bf16.msra.mxu0 0
      %605 = vmatprep.subr.bf16.mxu0 0
      %606 = vmatpush2.bf16.msra.mxu0 0
      %607 = vmatprep.subr.bf16.mxu0 0
      %608 = vmatpush2.bf16.msra.mxu0 0
      %609 = vmatprep.subr.bf16.mxu0 0
      %610 = vmatpush2.bf16.msra.mxu0 0
      %611 = vmatprep.subr.bf16.mxu0 0
      %612 = vmatpush2.bf16.msra.mxu0 0
      %613 = vmatprep.subr.bf16.mxu0 0
      %614 = vmatpush2.bf16.msra.mxu0 0
      %615 = vmatprep.subr.bf16.mxu0 0
      %616 = vmatpush2.bf16.msra.mxu0 0
      %617 = vmatprep.subr.bf16.mxu0 0
      %618 = vmatpush2.bf16.msra.mxu0 0
      %619 = vmatprep.mubr.bf16.mxu0 0
      %620 = vmatmul.mubr.bf16.gmra.mxu0 %v528
      %v621 = vpop.f32.mrf.mxu0
      %v622 = vadd.f32 0.0, %v621
      %v623 = vpop.f32.mrf.mxu0
      %v624 = vpop.f32.mrf.mxu0
      %v625 = vpop.f32.mrf.mxu0
      %626 = vdwg.mxu0
      %v627 = vld [vmem:[%s4] sm:$0xf]
      %v628 = vld [vmem:[%s4 + $0x4] sm:$0xf]
      %v629 = vld [vmem:[%s4 + $0x8] sm:$0xf]
      %v630 = vld [vmem:[%s4 + $0xc] sm:$0xf]
      %v635 = vunpack.c.l.b16 %v627
      %v636 = vunpack.c.l.b16 %v628
      %v637 = vunpack.c.l.b16 %v629
      %v638 = vunpack.c.l.b16 %v630
      %v639 = vpack.c.b16 %v636, %v635
      %v640 = vpack.c.b16 %v638, %v637
      %643 = vmatprep.subr.bf16.mxu0 0
      %644 = vmatpush1.bf16.msra.mxu0 0
      %645 = vmatprep.subr.bf16.mxu0 0
      %646 = vmatpush1.bf16.msra.mxu0 0
      %647 = vmatprep.subr.bf16.mxu0 0
      %648 = vmatpush1.bf16.msra.mxu0 0
      %649 = vmatprep.subr.bf16.mxu0 0
      %650 = vmatpush1.bf16.msra.mxu0 0
      %651 = vmatprep.subr.bf16.mxu0 0
      %652 = vmatpush1.bf16.msra.mxu0 0
      %653 = vmatprep.subr.bf16.mxu0 0
      %654 = vmatpush1.bf16.msra.mxu0 0
      %655 = vmatprep.subr.bf16.mxu0 0
      %656 = vmatpush1.bf16.msra.mxu0 %v640
      %657 = vmatprep.subr.bf16.mxu0 0
      %658 = vmatpush1.bf16.msra.mxu0 %v639
      %659 = vmatprep.subr.bf16.mxu0 0
      %660 = vmatpush2.bf16.msra.mxu0 0
      %661 = vmatprep.subr.bf16.mxu0 0
      %662 = vmatpush2.bf16.msra.mxu0 0
      %663 = vmatprep.subr.bf16.mxu0 0
      %664 = vmatpush2.bf16.msra.mxu0 0
      %665 = vmatprep.subr.bf16.mxu0 0
      %666 = vmatpush2.bf16.msra.mxu0 0
      %667 = vmatprep.subr.bf16.mxu0 0
      %668 = vmatpush2.bf16.msra.mxu0 0
      %669 = vmatprep.subr.bf16.mxu0 0
      %670 = vmatpush2.bf16.msra.mxu0 0
      %671 = vmatprep.subr.bf16.mxu0 0
      %672 = vmatpush2.bf16.msra.mxu0 0
      %673 = vmatprep.subr.bf16.mxu0 0
      %674 = vmatpush2.bf16.msra.mxu0 0
      %675 = vmatprep.mubr.bf16.mxu0 0
      %676 = vmatmul.mubr.bf16.gmra.mxu0 %v528
      %v677 = vpop.f32.mrf.mxu0
      %v678 = vadd.f32 0.0, %v677
      %v679 = vpop.f32.mrf.mxu0
      %v680 = vpop.f32.mrf.mxu0
      %v681 = vpop.f32.mrf.mxu0
      %682 = vdwg.mxu0
      %v683 = vld [vmem:[%s6] sm:$0xff]
      %v684 = vld [vmem:[%s7] sm:$0xff]
      %v685 = vlaneseq
      %v686 = vshrl.u32 %v685, 7
      %v687 = vlaneseq
      %v688 = vand.u32 %v687, 127
      %vm689 = vcmp.le.s32.totalorder %v688, %v686
      %v690 = vmul.f32 %v570, %v683
      %692 = vrot.lane.b32.xlu0 %v684, 4
      %v693 = vpop.permute.xlu0 %692
      %v695 = vmul.f32 %v570, %v693
      %697 = vrot.lane.b32.xlu0 %v695, 124
      %v698 = vpop.permute.xlu0 %697
      %v700 = vsub.f32 %v690, %v698
      %v701 = vpack.c.bf16 %v700, %v700
      %v702 = vmul.f32 %v570, %v684
      %704 = vrot.lane.b32.xlu0 %v683, 4
      %v705 = vpop.permute.xlu0 %704
      %v707 = vmul.f32 %v570, %v705
      %709 = vrot.lane.b32.xlu0 %v707, 124
      %v710 = vpop.permute.xlu0 %709
      %v712 = vadd.f32 %v702, %v710
      %v713 = vpack.c.bf16 %v712, %v712
      %v714 = vmul.f32 %v622, %v683
      %v715 = vmul.f32 %v622, %v693
      %717 = vrot.lane.b32.xlu0 %v715, 124
      %v718 = vpop.permute.xlu0 %717
      %v720 = vsub.f32 %v714, %v718
      %v721 = vpack.c.bf16 %v720, %v720
      %v722 = vmul.f32 %v622, %v684
      %v723 = vmul.f32 %v622, %v705
      %725 = vrot.lane.b32.xlu0 %v723, 124
      %v726 = vpop.permute.xlu0 %725
      %v728 = vadd.f32 %v722, %v726
      %v729 = vpack.c.bf16 %v728, %v728
      %vm730 = vcmask 31744
      %v732 = vsel %vm730, %v713, 0
      %v735 = vsel %vm730, %v729, 0
      %737 = vmatprep.subr.bf16.mxu0 0
      %738 = vmatpush1.bf16.xpose.msra.mxu0 0
      %739 = vmatprep.subr.bf16.mxu0 0
      %740 = vmatpush1.bf16.xpose.msra.mxu0 0
      %741 = vmatprep.subr.bf16.mxu0 0
      %742 = vmatpush1.bf16.xpose.msra.mxu0 0
      %743 = vmatprep.subr.bf16.mxu0 0
      %744 = vmatpush1.bf16.xpose.msra.mxu0 0
      %745 = vmatprep.subr.bf16.mxu0 0
      %746 = vmatpush1.bf16.xpose.msra.mxu0 0
      %747 = vmatprep.subr.bf16.mxu0 0
      %748 = vmatpush1.bf16.xpose.msra.mxu0 0
      %749 = vmatprep.subr.bf16.mxu0 0
      %750 = vmatpush1.bf16.xpose.msra.mxu0 0
      %751 = vmatprep.subr.bf16.mxu0 0
      %752 = vmatpush1.bf16.xpose.msra.mxu0 %v735
      %753 = vmatprep.subr.bf16.mxu0 0
      %754 = vmatpush2.bf16.xpose.msra.mxu0 0
      %755 = vmatprep.subr.bf16.mxu0 0
      %756 = vmatpush2.bf16.xpose.msra.mxu0 0
      %757 = vmatprep.subr.bf16.mxu0 0
      %758 = vmatpush2.bf16.xpose.msra.mxu0 0
      %759 = vmatprep.subr.bf16.mxu0 0
      %760 = vmatpush2.bf16.xpose.msra.mxu0 0
      %761 = vmatprep.subr.bf16.mxu0 0
      %762 = vmatpush2.bf16.xpose.msra.mxu0 0
      %763 = vmatprep.subr.bf16.mxu0 0
      %764 = vmatpush2.bf16.xpose.msra.mxu0 0
      %765 = vmatprep.subr.bf16.mxu0 0
      %766 = vmatpush2.bf16.xpose.msra.mxu0 0
      %767 = vmatprep.subr.bf16.mxu0 0
      %768 = vmatpush2.bf16.xpose.msra.mxu0 0
      %769 = vmatprep.mubr.bf16.mxu0 0
      %770 = vmatmul.mubr.bf16.gmra.mxu0 %v732
      %v771 = vpop.f32.mrf.mxu0
      %v772 = vadd.f32 0.0, %v771
      %v773 = vpop.f32.mrf.mxu0
      %v774 = vpop.f32.mrf.mxu0
      %v775 = vpop.f32.mrf.mxu0
      %776 = vdwg.mxu0
      %v778 = vsel %vm730, %v701, 0
      %v781 = vsel %vm730, %v721, 0
      %783 = vmatprep.subr.bf16.mxu0 0
      %784 = vmatpush1.bf16.xpose.msra.mxu0 0
      %785 = vmatprep.subr.bf16.mxu0 0
      %786 = vmatpush1.bf16.xpose.msra.mxu0 0
      %787 = vmatprep.subr.bf16.mxu0 0
      %788 = vmatpush1.bf16.xpose.msra.mxu0 0
      %789 = vmatprep.subr.bf16.mxu0 0
      %790 = vmatpush1.bf16.xpose.msra.mxu0 0
      %791 = vmatprep.subr.bf16.mxu0 0
      %792 = vmatpush1.bf16.xpose.msra.mxu0 0
      %793 = vmatprep.subr.bf16.mxu0 0
      %794 = vmatpush1.bf16.xpose.msra.mxu0 0
      %795 = vmatprep.subr.bf16.mxu0 0
      %796 = vmatpush1.bf16.xpose.msra.mxu0 0
      %797 = vmatprep.subr.bf16.mxu0 0
      %798 = vmatpush1.bf16.xpose.msra.mxu0 %v781
      %799 = vmatprep.subr.bf16.mxu0 0
      %800 = vmatpush2.bf16.xpose.msra.mxu0 0
      %801 = vmatprep.subr.bf16.mxu0 0
      %802 = vmatpush2.bf16.xpose.msra.mxu0 0
      %803 = vmatprep.subr.bf16.mxu0 0
      %804 = vmatpush2.bf16.xpose.msra.mxu0 0
      %805 = vmatprep.subr.bf16.mxu0 0
      %806 = vmatpush2.bf16.xpose.msra.mxu0 0
      %807 = vmatprep.subr.bf16.mxu0 0
      %808 = vmatpush2.bf16.xpose.msra.mxu0 0
      %809 = vmatprep.subr.bf16.mxu0 0
      %810 = vmatpush2.bf16.xpose.msra.mxu0 0
      %811 = vmatprep.subr.bf16.mxu0 0
      %812 = vmatpush2.bf16.xpose.msra.mxu0 0
      %813 = vmatprep.subr.bf16.mxu0 0
      %814 = vmatpush2.bf16.xpose.msra.mxu0 0
      %815 = vmatprep.mubr.bf16.mxu0 0
      %816 = vmatmul.mubr.bf16.gmra.mxu0 %v778
      %v817 = vpop.f32.mrf.mxu0
      %v818 = vadd.f32 %v772, %v817
      %v819 = vpop.f32.mrf.mxu0
      %v820 = vpop.f32.mrf.mxu0
      %v821 = vpop.f32.mrf.mxu0
      %822 = vdwg.mxu0
      %v823 = vsel %vm689, %v818, -1e+30
      %vm824 = vcmask 64512
      %v825 = vsel %vm824, %v823, -inf
      %826 = vmax.xlane.f32.xlu0 %v825
      %v827 = vpop.xlane.xlu0 %826
      %v828 = vsub.f32 %v823, %v827
      %v829 = vmul.f32 %v828, 1.442695
      %v830 = vpow.pop %v829
      %v831 = vsel %vm824, %v830, 0.0
      %832 = vadd.xlane.f32.xlu0 %v831
      %v833 = vpop.xlane.xlu0 %832
      %v834 = vrcp.pop %v833
      %v835 = vmul.f32 %v830, %v834
      %v836 = vpack.c.bf16 %v835, %v835
      %v837 = vpack.c.bf16 %v678, %v678
      %v839 = vsel %vm824, %v836, 0
      %vm841 = vcmask 1043456
      %v843 = vsel %vm841, %v837, 0
      %845 = vmatprep.subr.bf16.mxu0 0
      %846 = vmatpush1.bf16.msra.mxu0 0
      %847 = vmatprep.subr.bf16.mxu0 0
      %848 = vmatpush1.bf16.msra.mxu0 0
      %849 = vmatprep.subr.bf16.mxu0 0
      %850 = vmatpush1.bf16.msra.mxu0 0
      %851 = vmatprep.subr.bf16.mxu0 0
      %852 = vmatpush1.bf16.msra.mxu0 0
      %853 = vmatprep.subr.bf16.mxu0 0
      %854 = vmatpush1.bf16.msra.mxu0 0
      %855 = vmatprep.subr.bf16.mxu0 0
      %856 = vmatpush1.bf16.msra.mxu0 0
      %857 = vmatprep.subr.bf16.mxu0 0
      %858 = vmatpush1.bf16.msra.mxu0 0
      %859 = vmatprep.subr.bf16.mxu0 0
      %860 = vmatpush1.bf16.msra.mxu0 %v843
      %861 = vmatprep.subr.bf16.mxu0 0
      %862 = vmatpush2.bf16.msra.mxu0 0
      %863 = vmatprep.subr.bf16.mxu0 0
      %864 = vmatpush2.bf16.msra.mxu0 0
      %865 = vmatprep.subr.bf16.mxu0 0
      %866 = vmatpush2.bf16.msra.mxu0 0
      %867 = vmatprep.subr.bf16.mxu0 0
      %868 = vmatpush2.bf16.msra.mxu0 0
      %869 = vmatprep.subr.bf16.mxu0 0
      %870 = vmatpush2.bf16.msra.mxu0 0
      %871 = vmatprep.subr.bf16.mxu0 0
      %872 = vmatpush2.bf16.msra.mxu0 0
      %873 = vmatprep.subr.bf16.mxu0 0
      %874 = vmatpush2.bf16.msra.mxu0 0
      %875 = vmatprep.subr.bf16.mxu0 0
      %876 = vmatpush2.bf16.msra.mxu0 0
      %877 = vmatprep.mubr.bf16.mxu0 0
      %878 = vmatmul.mubr.bf16.gmra.mxu0 %v839
      %v879 = vpop.f32.mrf.mxu0
      %v880 = vadd.f32 0.0, %v879
      %v881 = vpop.f32.mrf.mxu0
      %v882 = vpop.f32.mrf.mxu0
      %v883 = vpop.f32.mrf.mxu0
      %884 = vdwg.mxu0
      %885 = vst.msk [vmem:[#allocation2] sm:$0xff] %vm824, %v880
      %886 = vrot.lane.b32.xlu0 %v683, 8
      %v887 = vpop.permute.xlu0 %886
      %v889 = vmul.f32 %v570, %v887
      %890 = vrot.lane.b32.xlu0 %v684, 12
      %v891 = vpop.permute.xlu0 %890
      %v893 = vmul.f32 %v570, %v891
      %895 = vrot.lane.b32.xlu0 %v893, 124
      %v896 = vpop.permute.xlu0 %895
      %v898 = vsub.f32 %v889, %v896
      %v899 = vpack.c.bf16 %v898, %v898
      %900 = vrot.lane.b32.xlu0 %v684, 8
      %v901 = vpop.permute.xlu0 %900
      %v903 = vmul.f32 %v570, %v901
      %904 = vrot.lane.b32.xlu0 %v683, 12
      %v905 = vpop.permute.xlu0 %904
      %v907 = vmul.f32 %v570, %v905
      %909 = vrot.lane.b32.xlu0 %v907, 124
      %v910 = vpop.permute.xlu0 %909
      %v912 = vadd.f32 %v903, %v910
      %v913 = vpack.c.bf16 %v912, %v912
      %v914 = vmul.f32 %v622, %v887
      %v915 = vmul.f32 %v622, %v891
      %917 = vrot.lane.b32.xlu0 %v915, 124
      %v918 = vpop.permute.xlu0 %917
      %v920 = vsub.f32 %v914, %v918
      %v921 = vpack.c.bf16 %v920, %v920
      %v922 = vmul.f32 %v622, %v901
      %v923 = vmul.f32 %v622, %v905
      %925 = vrot.lane.b32.xlu0 %v923, 124
      %v926 = vpop.permute.xlu0 %925
      %v928 = vadd.f32 %v922, %v926
      %v929 = vpack.c.bf16 %v928, %v928
      %931 = vrot.lane.b32.xlu0 %v913, 120
      %v932 = vpop.permute.xlu0 %931
      %934 = vrot.lane.b32.xlu0 %v929, 120
      %v935 = vpop.permute.xlu0 %934
      %v937 = vsel %vm730, %v932, 0
      %v940 = vsel %vm730, %v935, 0
      %942 = vmatprep.subr.bf16.mxu0 0
      %943 = vmatpush1.bf16.xpose.msra.mxu0 0
      %944 = vmatprep.subr.bf16.mxu0 0
      %945 = vmatpush1.bf16.xpose.msra.mxu0 0
      %946 = vmatprep.subr.bf16.mxu0 0
      %947 = vmatpush1.bf16.xpose.msra.mxu0 0
      %948 = vmatprep.subr.bf16.mxu0 0
      %949 = vmatpush1.bf16.xpose.msra.mxu0 0
      %950 = vmatprep.subr.bf16.mxu0 0
      %951 = vmatpush1.bf16.xpose.msra.mxu0 0
      %952 = vmatprep.subr.bf16.mxu0 0
      %953 = vmatpush1.bf16.xpose.msra.mxu0 0
      %954 = vmatprep.subr.bf16.mxu0 0
      %955 = vmatpush1.bf16.xpose.msra.mxu0 0
      %956 = vmatprep.subr.bf16.mxu0 0
      %957 = vmatpush1.bf16.xpose.msra.mxu0 %v940
      %958 = vmatprep.subr.bf16.mxu0 0
      %959 = vmatpush2.bf16.xpose.msra.mxu0 0
      %960 = vmatprep.subr.bf16.mxu0 0
      %961 = vmatpush2.bf16.xpose.msra.mxu0 0
      %962 = vmatprep.subr.bf16.mxu0 0
      %963 = vmatpush2.bf16.xpose.msra.mxu0 0
      %964 = vmatprep.subr.bf16.mxu0 0
      %965 = vmatpush2.bf16.xpose.msra.mxu0 0
      %966 = vmatprep.subr.bf16.mxu0 0
      %967 = vmatpush2.bf16.xpose.msra.mxu0 0
      %968 = vmatprep.subr.bf16.mxu0 0
      %969 = vmatpush2.bf16.xpose.msra.mxu0 0
      %970 = vmatprep.subr.bf16.mxu0 0
      %971 = vmatpush2.bf16.xpose.msra.mxu0 0
      %972 = vmatprep.subr.bf16.mxu0 0
      %973 = vmatpush2.bf16.xpose.msra.mxu0 0
      %974 = vmatprep.mubr.bf16.mxu0 0
      %975 = vmatmul.mubr.bf16.gmra.mxu0 %v937
      %v976 = vpop.f32.mrf.mxu0
      %v977 = vadd.f32 0.0, %v976
      %v978 = vpop.f32.mrf.mxu0
      %v979 = vpop.f32.mrf.mxu0
      %v980 = vpop.f32.mrf.mxu0
      %981 = vdwg.mxu0
      %983 = vrot.lane.b32.xlu0 %v899, 120
      %v984 = vpop.permute.xlu0 %983
      %986 = vrot.lane.b32.xlu0 %v921, 120
      %v987 = vpop.permute.xlu0 %986
      %v989 = vsel %vm730, %v984, 0
      %v992 = vsel %vm730, %v987, 0
      %994 = vmatprep.subr.bf16.mxu0 0
      %995 = vmatpush1.bf16.xpose.msra.mxu0 0
      %996 = vmatprep.subr.bf16.mxu0 0
      %997 = vmatpush1.bf16.xpose.msra.mxu0 0
      %998 = vmatprep.subr.bf16.mxu0 0
      %999 = vmatpush1.bf16.xpose.msra.mxu0 0
      %1000 = vmatprep.subr.bf16.mxu0 0
      %1001 = vmatpush1.bf16.xpose.msra.mxu0 0
      %1002 = vmatprep.subr.bf16.mxu0 0
      %1003 = vmatpush1.bf16.xpose.msra.mxu0 0
      %1004 = vmatprep.subr.bf16.mxu0 0
      %1005 = vmatpush1.bf16.xpose.msra.mxu0 0
      %1006 = vmatprep.subr.bf16.mxu0 0
      %1007 = vmatpush1.bf16.xpose.msra.mxu0 0
      %1008 = vmatprep.subr.bf16.mxu0 0
      %1009 = vmatpush1.bf16.xpose.msra.mxu0 %v992
      %1010 = vmatprep.subr.bf16.mxu0 0
      %1011 = vmatpush2.bf16.xpose.msra.mxu0 0
      %1012 = vmatprep.subr.bf16.mxu0 0
      %1013 = vmatpush2.bf16.xpose.msra.mxu0 0
      %1014 = vmatprep.subr.bf16.mxu0 0
      %1015 = vmatpush2.bf16.xpose.msra.mxu0 0
      %1016 = vmatprep.subr.bf16.mxu0 0
      %1017 = vmatpush2.bf16.xpose.msra.mxu0 0
      %1018 = vmatprep.subr.bf16.mxu0 0
      %1019 = vmatpush2.bf16.xpose.msra.mxu0 0
      %1020 = vmatprep.subr.bf16.mxu0 0
      %1021 = vmatpush2.bf16.xpose.msra.mxu0 0
      %1022 = vmatprep.subr.bf16.mxu0 0
      %1023 = vmatpush2.bf16.xpose.msra.mxu0 0
      %1024 = vmatprep.subr.bf16.mxu0 0
      %1025 = vmatpush2.bf16.xpose.msra.mxu0 0
      %1026 = vmatprep.mubr.bf16.mxu0 0
      %1027 = vmatmul.mubr.bf16.gmra.mxu0 %v989
      %v1028 = vpop.f32.mrf.mxu0
      %v1029 = vadd.f32 %v977, %v1028
      %v1030 = vpop.f32.mrf.mxu0
      %v1031 = vpop.f32.mrf.mxu0
      %v1032 = vpop.f32.mrf.mxu0
      %1033 = vdwg.mxu0
      %v1034 = vsel %vm689, %v1029, -1e+30
      %v1035 = vsel %vm824, %v1034, -inf
      %1036 = vmax.xlane.f32.xlu0 %v1035
      %v1037 = vpop.xlane.xlu0 %1036
      %v1038 = vsub.f32 %v1034, %v1037
      %v1039 = vmul.f32 %v1038, 1.442695
      %v1040 = vpow.pop %v1039
      %v1041 = vsel %vm824, %v1040, 0.0
      %1042 = vadd.xlane.f32.xlu0 %v1041
      %v1043 = vpop.xlane.xlu0 %1042
      %v1044 = vrcp.pop %v1043
      %v1045 = vmul.f32 %v1040, %v1044
      %v1046 = vpack.c.bf16 %v1045, %v1045
      %1048 = vrot.lane.b32.xlu0 %v837, 120
      %v1049 = vpop.permute.xlu0 %1048
      %v1051 = vsel %vm824, %v1046, 0
      %v1054 = vsel %vm841, %v1049, 0
      %1056 = vmatprep.subr.bf16.mxu0 0
      %1057 = vmatpush1.bf16.msra.mxu0 0
      %1058 = vmatprep.subr.bf16.mxu0 0
      %1059 = vmatpush1.bf16.msra.mxu0 0
      %1060 = vmatprep.subr.bf16.mxu0 0
      %1061 = vmatpush1.bf16.msra.mxu0 0
      %1062 = vmatprep.subr.bf16.mxu0 0
      %1063 = vmatpush1.bf16.msra.mxu0 0
      %1064 = vmatprep.subr.bf16.mxu0 0
      %1065 = vmatpush1.bf16.msra.mxu0 0
      %1066 = vmatprep.subr.bf16.mxu0 0
      %1067 = vmatpush1.bf16.msra.mxu0 0
      %1068 = vmatprep.subr.bf16.mxu0 0
      %1069 = vmatpush1.bf16.msra.mxu0 0
      %1070 = vmatprep.subr.bf16.mxu0 0
      %1071 = vmatpush1.bf16.msra.mxu0 %v1054
      %1072 = vmatprep.subr.bf16.mxu0 0
      %1073 = vmatpush2.bf16.msra.mxu0 0
      %1074 = vmatprep.subr.bf16.mxu0 0
      %1075 = vmatpush2.bf16.msra.mxu0 0
      %1076 = vmatprep.subr.bf16.mxu0 0
      %1077 = vmatpush2.bf16.msra.mxu0 0
      %1078 = vmatprep.subr.bf16.mxu0 0
      %1079 = vmatpush2.bf16.msra.mxu0 0
      %1080 = vmatprep.subr.bf16.mxu0 0
      %1081 = vmatpush2.bf16.msra.mxu0 0
      %1082 = vmatprep.subr.bf16.mxu0 0
      %1083 = vmatpush2.bf16.msra.mxu0 0
      %1084 = vmatprep.subr.bf16.mxu0 0
      %1085 = vmatpush2.bf16.msra.mxu0 0
      %1086 = vmatprep.subr.bf16.mxu0 0
      %1087 = vmatpush2.bf16.msra.mxu0 0
      %1088 = vmatprep.mubr.bf16.mxu0 0
      %1089 = vmatmul.mubr.bf16.gmra.mxu0 %v1051
      %v1090 = vpop.f32.mrf.mxu0
      %v1091 = vadd.f32 0.0, %v1090
      %v1092 = vpop.f32.mrf.mxu0
      %v1093 = vpop.f32.mrf.mxu0
      %v1094 = vpop.f32.mrf.mxu0
      %1095 = vdwg.mxu0
      %1097 = vrot.lane.b32.xlu0 %v1091, 8
      %v1098 = vpop.permute.xlu0 %1097
      %vm1100 = vcmask 130112
      %1101 = vst.msk [vmem:[#allocation2] sm:$0xff] %vm1100, %v1098
      %1102 = vrot.lane.b32.xlu0 %v683, 16
      %v1103 = vpop.permute.xlu0 %1102
      %v1105 = vmul.f32 %v570, %v1103
      %1106 = vrot.lane.b32.xlu0 %v684, 20
      %v1107 = vpop.permute.xlu0 %1106
      %v1109 = vmul.f32 %v570, %v1107
      %1111 = vrot.lane.b32.xlu0 %v1109, 124
      %v1112 = vpop.permute.xlu0 %1111
      %v1114 = vsub.f32 %v1105, %v1112
      %v1115 = vpack.c.bf16 %v1114, %v1114
      %1116 = vrot.lane.b32.xlu0 %v684, 16
      %v1117 = vpop.permute.xlu0 %1116
      %v1119 = vmul.f32 %v570, %v1117
      %1120 = vrot.lane.b32.xlu0 %v683, 20
      %v1121 = vpop.permute.xlu0 %1120
      %v1123 = vmul.f32 %v570, %v1121
      %1125 = vrot.lane.b32.xlu0 %v1123, 124
      %v1126 = vpop.permute.xlu0 %1125
      %v1128 = vadd.f32 %v1119, %v1126
      %v1129 = vpack.c.bf16 %v1128, %v1128
      %v1130 = vmul.f32 %v622, %v1103
      %v1131 = vmul.f32 %v622, %v1107
      %1133 = vrot.lane.b32.xlu0 %v1131, 124
      %v1134 = vpop.permute.xlu0 %1133
      %v1136 = vsub.f32 %v1130, %v1134
      %v1137 = vpack.c.bf16 %v1136, %v1136
      %v1138 = vmul.f32 %v622, %v1117
      %v1139 = vmul.f32 %v622, %v1121
      %1141 = vrot.lane.b32.xlu0 %v1139, 124
      %v1142 = vpop.permute.xlu0 %1141
      %v1144 = vadd.f32 %v1138, %v1142
      %v1145 = vpack.c.bf16 %v1144, %v1144
      %1147 = vrot.lane.b32.xlu0 %v1129, 112
      %v1148 = vpop.permute.xlu0 %1147
      %1150 = vrot.lane.b32.xlu0 %v1145, 112
      %v1151 = vpop.permute.xlu0 %1150
      %v1153 = vsel %vm730, %v1148, 0
      %v1156 = vsel %vm730, %v1151, 0
      %1158 = vmatprep.subr.bf16.mxu0 0
      %1159 = vmatpush1.bf16.xpose.msra.mxu0 0
      %1160 = vmatprep.subr.bf16.mxu0 0
      %1161 = vmatpush1.bf16.xpose.msra.mxu0 0
      %1162 = vmatprep.subr.bf16.mxu0 0
      %1163 = vmatpush1.bf16.xpose.msra.mxu0 0
      %1164 = vmatprep.subr.bf16.mxu0 0
      %1165 = vmatpush1.bf16.xpose.msra.mxu0 0
      %1166 = vmatprep.subr.bf16.mxu0 0
      %1167 = vmatpush1.bf16.xpose.msra.mxu0 0
      %1168 = vmatprep.subr.bf16.mxu0 0
      %1169 = vmatpush1.bf16.xpose.msra.mxu0 0
      %1170 = vmatprep.subr.bf16.mxu0 0
      %1171 = vmatpush1.bf16.xpose.msra.mxu0 0
      %1172 = vmatprep.subr.bf16.mxu0 0
      %1173 = vmatpush1.bf16.xpose.msra.mxu0 %v1156
      %1174 = vmatprep.subr.bf16.mxu0 0
      %1175 = vmatpush2.bf16.xpose.msra.mxu0 0
      %1176 = vmatprep.subr.bf16.mxu0 0
      %1177 = vmatpush2.bf16.xpose.msra.mxu0 0
      %1178 = vmatprep.subr.bf16.mxu0 0
      %1179 = vmatpush2.bf16.xpose.msra.mxu0 0
      %1180 = vmatprep.subr.bf16.mxu0 0
      %1181 = vmatpush2.bf16.xpose.msra.mxu0 0
      %1182 = vmatprep.subr.bf16.mxu0 0
      %1183 = vmatpush2.bf16.xpose.msra.mxu0 0
      %1184 = vmatprep.subr.bf16.mxu0 0
      %1185 = vmatpush2.bf16.xpose.msra.mxu0 0
      %1186 = vmatprep.subr.bf16.mxu0 0
      %1187 = vmatpush2.bf16.xpose.msra.mxu0 0
      %1188 = vmatprep.subr.bf16.mxu0 0
      %1189 = vmatpush2.bf16.xpose.msra.mxu0 0
      %1190 = vmatprep.mubr.bf16.mxu0 0
      %1191 = vmatmul.mubr.bf16.gmra.mxu0 %v1153
      %v1192 = vpop.f32.mrf.mxu0
      %v1193 = vadd.f32 0.0, %v1192
      %v1194 = vpop.f32.mrf.mxu0
      %v1195 = vpop.f32.mrf.mxu0
      %v1196 = vpop.f32.mrf.mxu0
      %1197 = vdwg.mxu0
      %1199 = vrot.lane.b32.xlu0 %v1115, 112
      %v1200 = vpop.permute.xlu0 %1199
      %1202 = vrot.lane.b32.xlu0 %v1137, 112
      %v1203 = vpop.permute.xlu0 %1202
      %v1205 = vsel %vm730, %v1200, 0
      %v1208 = vsel %vm730, %v1203, 0
      %1210 = vmatprep.subr.bf16.mxu0 0
      %1211 = vmatpush1.bf16.xpose.msra.mxu0 0
      %1212 = vmatprep.subr.bf16.mxu0 0
      %1213 = vmatpush1.bf16.xpose.msra.mxu0 0
      %1214 = vmatprep.subr.bf16.mxu0 0
      %1215 = vmatpush1.bf16.xpose.msra.mxu0 0
      %1216 = vmatprep.subr.bf16.mxu0 0
      %1217 = vmatpush1.bf16.xpose.msra.mxu0 0
      %1218 = vmatprep.subr.bf16.mxu0 0
      %1219 = vmatpush1.bf16.xpose.msra.mxu0 0
      %1220 = vmatprep.subr.bf16.mxu0 0
      %1221 = vmatpush1.bf16.xpose.msra.mxu0 0
      %1222 = vmatprep.subr.bf16.mxu0 0
      %1223 = vmatpush1.bf16.xpose.msra.mxu0 0
      %1224 = vmatprep.subr.bf16.mxu0 0
      %1225 = vmatpush1.bf16.xpose.msra.mxu0 %v1208
      %1226 = vmatprep.subr.bf16.mxu0 0
      %1227 = vmatpush2.bf16.xpose.msra.mxu0 0
      %1228 = vmatprep.subr.bf16.mxu0 0
      %1229 = vmatpush2.bf16.xpose.msra.mxu0 0
      %1230 = vmatprep.subr.bf16.mxu0 0
      %1231 = vmatpush2.bf16.xpose.msra.mxu0 0
      %1232 = vmatprep.subr.bf16.mxu0 0
      %1233 = vmatpush2.bf16.xpose.msra.mxu0 0
      %1234 = vmatprep.subr.bf16.mxu0 0
      %1235 = vmatpush2.bf16.xpose.msra.mxu0 0
      %1236 = vmatprep.subr.bf16.mxu0 0
      %1237 = vmatpush2.bf16.xpose.msra.mxu0 0
      %1238 = vmatprep.subr.bf16.mxu0 0
      %1239 = vmatpush2.bf16.xpose.msra.mxu0 0
      %1240 = vmatprep.subr.bf16.mxu0 0
      %1241 = vmatpush2.bf16.xpose.msra.mxu0 0
      %1242 = vmatprep.mubr.bf16.mxu0 0
      %1243 = vmatmul.mubr.bf16.gmra.mxu0 %v1205
      %v1244 = vpop.f32.mrf.mxu0
      %v1245 = vadd.f32 %v1193, %v1244
      %v1246 = vpop.f32.mrf.mxu0
      %v1247 = vpop.f32.mrf.mxu0
      %v1248 = vpop.f32.mrf.mxu0
      %1249 = vdwg.mxu0
      %v1250 = vsel %vm689, %v1245, -1e+30
      %v1251 = vsel %vm824, %v1250, -inf
      %1252 = vmax.xlane.f32.xlu0 %v1251
      %v1253 = vpop.xlane.xlu0 %1252
      %v1254 = vsub.f32 %v1250, %v1253
      %v1255 = vmul.f32 %v1254, 1.442695
      %v1256 = vpow.pop %v1255
      %v1257 = vsel %vm824, %v1256, 0.0
      %1258 = vadd.xlane.f32.xlu0 %v1257
      %v1259 = vpop.xlane.xlu0 %1258
      %v1260 = vrcp.pop %v1259
      %v1261 = vmul.f32 %v1256, %v1260
      %v1262 = vpack.c.bf16 %v1261, %v1261
      %1263 = vrot.lane.b32.xlu0 %v837, 112
      %v1264 = vpop.permute.xlu0 %1263
      %v1266 = vsel %vm824, %v1262, 0
      %v1269 = vsel %vm841, %v1264, 0
      %1271 = vmatprep.subr.bf16.mxu0 0
      %1272 = vmatpush1.bf16.msra.mxu0 0
      %1273 = vmatprep.subr.bf16.mxu0 0
      %1274 = vmatpush1.bf16.msra.mxu0 0
      %1275 = vmatprep.subr.bf16.mxu0 0
      %1276 = vmatpush1.bf16.msra.mxu0 0
      %1277 = vmatprep.subr.bf16.mxu0 0
      %1278 = vmatpush1.bf16.msra.mxu0 0
      %1279 = vmatprep.subr.bf16.mxu0 0
      %1280 = vmatpush1.bf16.msra.mxu0 0
      %1281 = vmatprep.subr.bf16.mxu0 0
      %1282 = vmatpush1.bf16.msra.mxu0 0
      %1283 = vmatprep.subr.bf16.mxu0 0
      %1284 = vmatpush1.bf16.msra.mxu0 0
      %1285 = vmatprep.subr.bf16.mxu0 0
      %1286 = vmatpush1.bf16.msra.mxu0 %v1269
      %1287 = vmatprep.subr.bf16.mxu0 0
      %1288 = vmatpush2.bf16.msra.mxu0 0
      %1289 = vmatprep.subr.bf16.mxu0 0
      %1290 = vmatpush2.bf16.msra.mxu0 0
      %1291 = vmatprep.subr.bf16.mxu0 0
      %1292 = vmatpush2.bf16.msra.mxu0 0
      %1293 = vmatprep.subr.bf16.mxu0 0
      %1294 = vmatpush2.bf16.msra.mxu0 0
      %1295 = vmatprep.subr.bf16.mxu0 0
      %1296 = vmatpush2.bf16.msra.mxu0 0
      %1297 = vmatprep.subr.bf16.mxu0 0
      %1298 = vmatpush2.bf16.msra.mxu0 0
      %1299 = vmatprep.subr.bf16.mxu0 0
      %1300 = vmatpush2.bf16.msra.mxu0 0
      %1301 = vmatprep.subr.bf16.mxu0 0
      %1302 = vmatpush2.bf16.msra.mxu0 0
      %1303 = vmatprep.mubr.bf16.mxu0 0
      %1304 = vmatmul.mubr.bf16.gmra.mxu0 %v1266
      %v1305 = vpop.f32.mrf.mxu0
      %v1306 = vadd.f32 0.0, %v1305
      %v1307 = vpop.f32.mrf.mxu0
      %v1308 = vpop.f32.mrf.mxu0
      %v1309 = vpop.f32.mrf.mxu0
      %1310 = vdwg.mxu0
      %1312 = vrot.lane.b32.xlu0 %v1306, 16
      %v1313 = vpop.permute.xlu0 %1312
      %vm1315 = vcmask 195712
      %1316 = vst.msk [vmem:[#allocation2] sm:$0xff] %vm1315, %v1313
      %1317 = vrot.lane.b32.xlu0 %v683, 24
      %v1318 = vpop.permute.xlu0 %1317
      %v1320 = vmul.f32 %v570, %v1318
      %1321 = vrot.lane.b32.xlu0 %v684, 28
      %v1322 = vpop.permute.xlu0 %1321
      %v1324 = vmul.f32 %v570, %v1322
      %1326 = vrot.lane.b32.xlu0 %v1324, 124
      %v1327 = vpop.permute.xlu0 %1326
      %v1329 = vsub.f32 %v1320, %v1327
      %v1330 = vpack.c.bf16 %v1329, %v1329
      %1331 = vrot.lane.b32.xlu0 %v684, 24
      %v1332 = vpop.permute.xlu0 %1331
      %v1334 = vmul.f32 %v570, %v1332
      %1335 = vrot.lane.b32.xlu0 %v683, 28
      %v1336 = vpop.permute.xlu0 %1335
      %v1338 = vmul.f32 %v570, %v1336
      %1340 = vrot.lane.b32.xlu0 %v1338, 124
      %v1341 = vpop.permute.xlu0 %1340
      %v1343 = vadd.f32 %v1334, %v1341
      %v1344 = vpack.c.bf16 %v1343, %v1343
      %v1345 = vmul.f32 %v622, %v1318
      %v1346 = vmul.f32 %v622, %v1322
      %1348 = vrot.lane.b32.xlu0 %v1346, 124
      %v1349 = vpop.permute.xlu0 %1348
      %v1351 = vsub.f32 %v1345, %v1349
      %v1352 = vpack.c.bf16 %v1351, %v1351
      %v1353 = vmul.f32 %v622, %v1332
      %v1354 = vmul.f32 %v622, %v1336
      %1356 = vrot.lane.b32.xlu0 %v1354, 124
      %v1357 = vpop.permute.xlu0 %1356
      %v1359 = vadd.f32 %v1353, %v1357
      %v1360 = vpack.c.bf16 %v1359, %v1359
      %1362 = vrot.lane.b32.xlu0 %v1344, 104
      %v1363 = vpop.permute.xlu0 %1362
      %1365 = vrot.lane.b32.xlu0 %v1360, 104
      %v1366 = vpop.permute.xlu0 %1365
      %v1368 = vsel %vm730, %v1363, 0
      %v1371 = vsel %vm730, %v1366, 0
      %1373 = vmatprep.subr.bf16.mxu0 0
      %1374 = vmatpush1.bf16.xpose.msra.mxu0 0
      %1375 = vmatprep.subr.bf16.mxu0 0
      %1376 = vmatpush1.bf16.xpose.msra.mxu0 0
      %1377 = vmatprep.subr.bf16.mxu0 0
      %1378 = vmatpush1.bf16.xpose.msra.mxu0 0
      %1379 = vmatprep.subr.bf16.mxu0 0
      %1380 = vmatpush1.bf16.xpose.msra.mxu0 0
      %1381 = vmatprep.subr.bf16.mxu0 0
      %1382 = vmatpush1.bf16.xpose.msra.mxu0 0
      %1383 = vmatprep.subr.bf16.mxu0 0
      %1384 = vmatpush1.bf16.xpose.msra.mxu0 0
      %1385 = vmatprep.subr.bf16.mxu0 0
      %1386 = vmatpush1.bf16.xpose.msra.mxu0 0
      %1387 = vmatprep.subr.bf16.mxu0 0
      %1388 = vmatpush1.bf16.xpose.msra.mxu0 %v1371
      %1389 = vmatprep.subr.bf16.mxu0 0
      %1390 = vmatpush2.bf16.xpose.msra.mxu0 0
      %1391 = vmatprep.subr.bf16.mxu0 0
      %1392 = vmatpush2.bf16.xpose.msra.mxu0 0
      %1393 = vmatprep.subr.bf16.mxu0 0
      %1394 = vmatpush2.bf16.xpose.msra.mxu0 0
      %1395 = vmatprep.subr.bf16.mxu0 0
      %1396 = vmatpush2.bf16.xpose.msra.mxu0 0
      %1397 = vmatprep.subr.bf16.mxu0 0
      %1398 = vmatpush2.bf16.xpose.msra.mxu0 0
      %1399 = vmatprep.subr.bf16.mxu0 0
      %1400 = vmatpush2.bf16.xpose.msra.mxu0 0
      %1401 = vmatprep.subr.bf16.mxu0 0
      %1402 = vmatpush2.bf16.xpose.msra.mxu0 0
      %1403 = vmatprep.subr.bf16.mxu0 0
      %1404 = vmatpush2.bf16.xpose.msra.mxu0 0
      %1405 = vmatprep.mubr.bf16.mxu0 0
      %1406 = vmatmul.mubr.bf16.gmra.mxu0 %v1368
      %v1407 = vpop.f32.mrf.mxu0
      %v1408 = vadd.f32 0.0, %v1407
      %v1409 = vpop.f32.mrf.mxu0
      %v1410 = vpop.f32.mrf.mxu0
      %v1411 = vpop.f32.mrf.mxu0
      %1412 = vdwg.mxu0
      %1414 = vrot.lane.b32.xlu0 %v1330, 104
      %v1415 = vpop.permute.xlu0 %1414
      %1417 = vrot.lane.b32.xlu0 %v1352, 104
      %v1418 = vpop.permute.xlu0 %1417
      %v1420 = vsel %vm730, %v1415, 0
      %v1423 = vsel %vm730, %v1418, 0
      %1425 = vmatprep.subr.bf16.mxu0 0
      %1426 = vmatpush1.bf16.xpose.msra.mxu0 0
      %1427 = vmatprep.subr.bf16.mxu0 0
      %1428 = vmatpush1.bf16.xpose.msra.mxu0 0
      %1429 = vmatprep.subr.bf16.mxu0 0
      %1430 = vmatpush1.bf16.xpose.msra.mxu0 0
      %1431 = vmatprep.subr.bf16.mxu0 0
      %1432 = vmatpush1.bf16.xpose.msra.mxu0 0
      %1433 = vmatprep.subr.bf16.mxu0 0
      %1434 = vmatpush1.bf16.xpose.msra.mxu0 0
      %1435 = vmatprep.subr.bf16.mxu0 0
      %1436 = vmatpush1.bf16.xpose.msra.mxu0 0
      %1437 = vmatprep.subr.bf16.mxu0 0
      %1438 = vmatpush1.bf16.xpose.msra.mxu0 0
      %1439 = vmatprep.subr.bf16.mxu0 0
      %1440 = vmatpush1.bf16.xpose.msra.mxu0 %v1423
      %1441 = vmatprep.subr.bf16.mxu0 0
      %1442 = vmatpush2.bf16.xpose.msra.mxu0 0
      %1443 = vmatprep.subr.bf16.mxu0 0
      %1444 = vmatpush2.bf16.xpose.msra.mxu0 0
      %1445 = vmatprep.subr.bf16.mxu0 0
      %1446 = vmatpush2.bf16.xpose.msra.mxu0 0
      %1447 = vmatprep.subr.bf16.mxu0 0
      %1448 = vmatpush2.bf16.xpose.msra.mxu0 0
      %1449 = vmatprep.subr.bf16.mxu0 0
      %1450 = vmatpush2.bf16.xpose.msra.mxu0 0
      %1451 = vmatprep.subr.bf16.mxu0 0
      %1452 = vmatpush2.bf16.xpose.msra.mxu0 0
      %1453 = vmatprep.subr.bf16.mxu0 0
      %1454 = vmatpush2.bf16.xpose.msra.mxu0 0
      %1455 = vmatprep.subr.bf16.mxu0 0
      %1456 = vmatpush2.bf16.xpose.msra.mxu0 0
      %1457 = vmatprep.mubr.bf16.mxu0 0
      %1458 = vmatmul.mubr.bf16.gmra.mxu0 %v1420
      %v1459 = vpop.f32.mrf.mxu0
      %v1460 = vadd.f32 %v1408, %v1459
      %v1461 = vpop.f32.mrf.mxu0
      %v1462 = vpop.f32.mrf.mxu0
      %v1463 = vpop.f32.mrf.mxu0
      %1464 = vdwg.mxu0
      %v1465 = vsel %vm689, %v1460, -1e+30
      %v1466 = vsel %vm824, %v1465, -inf
      %1467 = vmax.xlane.f32.xlu0 %v1466
      %v1468 = vpop.xlane.xlu0 %1467
      %v1469 = vsub.f32 %v1465, %v1468
      %v1470 = vmul.f32 %v1469, 1.442695
      %v1471 = vpow.pop %v1470
      %v1472 = vsel %vm824, %v1471, 0.0
      %1473 = vadd.xlane.f32.xlu0 %v1472
      %v1474 = vpop.xlane.xlu0 %1473
      %v1475 = vrcp.pop %v1474
      %v1476 = vmul.f32 %v1471, %v1475
      %v1477 = vpack.c.bf16 %v1476, %v1476
      %1478 = vrot.lane.b32.xlu0 %v837, 104
      %v1479 = vpop.permute.xlu0 %1478
      %v1481 = vsel %vm824, %v1477, 0
      %v1484 = vsel %vm841, %v1479, 0
      %1486 = vmatprep.subr.bf16.mxu0 0
      %1487 = vmatpush1.bf16.msra.mxu0 0
      %1488 = vmatprep.subr.bf16.mxu0 0
      %1489 = vmatpush1.bf16.msra.mxu0 0
      %1490 = vmatprep.subr.bf16.mxu0 0
      %1491 = vmatpush1.bf16.msra.mxu0 0
      %1492 = vmatprep.subr.bf16.mxu0 0
      %1493 = vmatpush1.bf16.msra.mxu0 0
      %1494 = vmatprep.subr.bf16.mxu0 0
      %1495 = vmatpush1.bf16.msra.mxu0 0
      %1496 = vmatprep.subr.bf16.mxu0 0
      %1497 = vmatpush1.bf16.msra.mxu0 0
      %1498 = vmatprep.subr.bf16.mxu0 0
      %1499 = vmatpush1.bf16.msra.mxu0 0
      %1500 = vmatprep.subr.bf16.mxu0 0
      %1501 = vmatpush1.bf16.msra.mxu0 %v1484
      %1502 = vmatprep.subr.bf16.mxu0 0
      %1503 = vmatpush2.bf16.msra.mxu0 0
      %1504 = vmatprep.subr.bf16.mxu0 0
      %1505 = vmatpush2.bf16.msra.mxu0 0
      %1506 = vmatprep.subr.bf16.mxu0 0
      %1507 = vmatpush2.bf16.msra.mxu0 0
      %1508 = vmatprep.subr.bf16.mxu0 0
      %1509 = vmatpush2.bf16.msra.mxu0 0
      %1510 = vmatprep.subr.bf16.mxu0 0
      %1511 = vmatpush2.bf16.msra.mxu0 0
      %1512 = vmatprep.subr.bf16.mxu0 0
      %1513 = vmatpush2.bf16.msra.mxu0 0
      %1514 = vmatprep.subr.bf16.mxu0 0
      %1515 = vmatpush2.bf16.msra.mxu0 0
      %1516 = vmatprep.subr.bf16.mxu0 0
      %1517 = vmatpush2.bf16.msra.mxu0 0
      %1518 = vmatprep.mubr.bf16.mxu0 0
      %1519 = vmatmul.mubr.bf16.gmra.mxu0 %v1481
      %v1520 = vpop.f32.mrf.mxu0
      %v1521 = vadd.f32 0.0, %v1520
      %v1522 = vpop.f32.mrf.mxu0
      %v1523 = vpop.f32.mrf.mxu0
      %v1524 = vpop.f32.mrf.mxu0
      %1525 = vdwg.mxu0
      %1527 = vrot.lane.b32.xlu0 %v1521, 24
      %v1528 = vpop.permute.xlu0 %1527
      %vm1530 = vcmask 261312
      %1531 = vst.msk [vmem:[#allocation2] sm:$0xff] %vm1530, %v1528
      %v1532 = vld [vmem:[#allocation2] sm:$0xff]
      %v1533 = vpack.c.bf16 %v1532, %v1532
      %v1534 = vld [vmem:[%s5] sm:$0xf]
      %v1535 = vld [vmem:[%s5 + $0x4] sm:$0xf]
      %v1536 = vld [vmem:[%s5 + $0x8] sm:$0xf]
      %v1537 = vld [vmem:[%s5 + $0xc] sm:$0xf]
      %v1542 = vunpack.c.l.b16 %v1534
      %v1543 = vunpack.c.l.b16 %v1535
      %v1544 = vunpack.c.l.b16 %v1536
      %v1545 = vunpack.c.l.b16 %v1537
      %v1546 = vpack.c.b16 %v1543, %v1542
      %v1547 = vpack.c.b16 %v1545, %v1544
      %v1551 = vsel %vm494, %v1533, 0
      %1553 = vmatprep.subr.bf16.mxu0 0
      %1554 = vmatpush1.bf16.msra.mxu0 0
      %1555 = vmatprep.subr.bf16.mxu0 0
      %1556 = vmatpush1.bf16.msra.mxu0 0
      %1557 = vmatprep.subr.bf16.mxu0 0
      %1558 = vmatpush1.bf16.msra.mxu0 0
      %1559 = vmatprep.subr.bf16.mxu0 0
      %1560 = vmatpush1.bf16.msra.mxu0 0
      %1561 = vmatprep.subr.bf16.mxu0 0
      %1562 = vmatpush1.bf16.msra.mxu0 0
      %1563 = vmatprep.subr.bf16.mxu0 0
      %1564 = vmatpush1.bf16.msra.mxu0 0
      %1565 = vmatprep.subr.bf16.mxu0 0
      %1566 = vmatpush1.bf16.msra.mxu0 %v1547
      %1567 = vmatprep.subr.bf16.mxu0 0
      %1568 = vmatpush1.bf16.msra.mxu0 %v1546
      %1569 = vmatprep.subr.bf16.mxu0 0
      %1570 = vmatpush2.bf16.msra.mxu0 0
      %1571 = vmatprep.subr.bf16.mxu0 0
      %1572 = vmatpush2.bf16.msra.mxu0 0
      %1573 = vmatprep.subr.bf16.mxu0 0
      %1574 = vmatpush2.bf16.msra.mxu0 0
      %1575 = vmatprep.subr.bf16.mxu0 0
      %1576 = vmatpush2.bf16.msra.mxu0 0
      %1577 = vmatprep.subr.bf16.mxu0 0
      %1578 = vmatpush2.bf16.msra.mxu0 0
      %1579 = vmatprep.subr.bf16.mxu0 0
      %1580 = vmatpush2.bf16.msra.mxu0 0
      %1581 = vmatprep.subr.bf16.mxu0 0
      %1582 = vmatpush2.bf16.msra.mxu0 0
      %1583 = vmatprep.subr.bf16.mxu0 0
      %1584 = vmatpush2.bf16.msra.mxu0 0
      %1585 = vmatprep.mubr.bf16.mxu0 0
      %1586 = vmatmul.mubr.bf16.gmra.mxu0 %v1551
      %v1587 = vpop.f32.mrf.mxu0
      %v1588 = vadd.f32 0.0, %v1587
      %v1589 = vpop.f32.mrf.mxu0
      %v1590 = vpop.f32.mrf.mxu0
      %v1591 = vpop.f32.mrf.mxu0
      %1592 = vdwg.mxu0
      %v1593 = vadd.f32 %v491, %v1588
      %v1594 = vld [vmem:[%s8] sm:$0x1]
      %v1595 = vmul.f32 %v1593, %v1593
      %v1596 = vsel %vm494, %v1595, 0.0
      %1597 = vadd.xlane.f32.xlu0 %v1596
      %v1598 = vpop.xlane.xlu0 %1597
      %v1599 = vmul.f32 %v1598, %v498
      %v1600 = vadd.f32 %v1599, 1e-06
      %v1601 = vrsqrt.pop %v1600
      %v1602 = vmul.f32 %v1593, %v1601
      %v1604 = vlaneseq
      %v1605 = vshrl.u32 %v1604, 7
      %v1606 = vsub.s32 0, %v1605
      %v1607 = vrot.slane %v1594, %v1606
      %v1609 = vmul.f32 %v1602, %v1607
      %v1610 = vpack.c.bf16 %v1609, %v1609
      %v1611 = vld [vmem:[%s9] sm:$0xf]
      %v1612 = vld [vmem:[%s9 + $0x4] sm:$0xf]
      %v1613 = vld [vmem:[%s9 + $0x8] sm:$0xf]
      %v1614 = vld [vmem:[%s9 + $0xc] sm:$0xf]
      %v1615 = vld [vmem:[%s10] sm:$0x1]
      %v1617 = vlaneseq
      %v1618 = vshrl.u32 %v1617, 7
      %v1619 = vsub.s32 0, %v1618
      %v1620 = vrot.slane %v1615, %v1619
      %v1626 = vunpack.c.l.b16 %v1611
      %v1627 = vunpack.c.l.b16 %v1612
      %v1628 = vunpack.c.l.b16 %v1613
      %v1629 = vunpack.c.l.b16 %v1614
      %v1630 = vpack.c.b16 %v1627, %v1626
      %v1631 = vpack.c.b16 %v1629, %v1628
      %v1635 = vsel %vm494, %v1610, 0
      %1637 = vmatprep.subr.bf16.mxu0 0
      %1638 = vmatpush1.bf16.msra.mxu0 0
      %1639 = vmatprep.subr.bf16.mxu0 0
      %1640 = vmatpush1.bf16.msra.mxu0 0
      %1641 = vmatprep.subr.bf16.mxu0 0
      %1642 = vmatpush1.bf16.msra.mxu0 0
      %1643 = vmatprep.subr.bf16.mxu0 0
      %1644 = vmatpush1.bf16.msra.mxu0 0
      %1645 = vmatprep.subr.bf16.mxu0 0
      %1646 = vmatpush1.bf16.msra.mxu0 0
      %1647 = vmatprep.subr.bf16.mxu0 0
      %1648 = vmatpush1.bf16.msra.mxu0 0
      %1649 = vmatprep.subr.bf16.mxu0 0
      %1650 = vmatpush1.bf16.msra.mxu0 %v1631
      %1651 = vmatprep.subr.bf16.mxu0 0
      %1652 = vmatpush1.bf16.msra.mxu0 %v1630
      %1653 = vmatprep.subr.bf16.mxu0 0
      %1654 = vmatpush2.bf16.msra.mxu0 0
      %1655 = vmatprep.subr.bf16.mxu0 0
      %1656 = vmatpush2.bf16.msra.mxu0 0
      %1657 = vmatprep.subr.bf16.mxu0 0
      %1658 = vmatpush2.bf16.msra.mxu0 0
      %1659 = vmatprep.subr.bf16.mxu0 0
      %1660 = vmatpush2.bf16.msra.mxu0 0
      %1661 = vmatprep.subr.bf16.mxu0 0
      %1662 = vmatpush2.bf16.msra.mxu0 0
      %1663 = vmatprep.subr.bf16.mxu0 0
      %1664 = vmatpush2.bf16.msra.mxu0 0
      %1665 = vmatprep.subr.bf16.mxu0 0
      %1666 = vmatpush2.bf16.msra.mxu0 0
      %1667 = vmatprep.subr.bf16.mxu0 0
      %1668 = vmatpush2.bf16.msra.mxu0 0
      %1669 = vmatprep.mubr.bf16.mxu0 0
      %1670 = vmatmul.mubr.bf16.gmra.mxu0 %v1635
      %v1671 = vpop.f32.mrf.mxu0
      %v1672 = vadd.f32 %v1620, %v1671
      %v1673 = vpop.f32.mrf.mxu0
      %v1674 = vpop.f32.mrf.mxu0
      %v1675 = vpop.f32.mrf.mxu0
      %1676 = vdwg.mxu0
      %v1677 = vld [vmem:[%s11] sm:$0xf]
      %v1678 = vld [vmem:[%s11 + $0x4] sm:$0xf]
      %v1679 = vld [vmem:[%s11 + $0x8] sm:$0xf]
      %v1680 = vld [vmem:[%s11 + $0xc] sm:$0xf]
      %v1681 = vld [vmem:[%s12] sm:$0x1]
      %v1683 = vlaneseq
      %v1684 = vshrl.u32 %v1683, 7
      %v1685 = vsub.s32 0, %v1684
      %v1686 = vrot.slane %v1681, %v1685
      %v1692 = vunpack.c.l.b16 %v1677
      %v1693 = vunpack.c.l.b16 %v1678
      %v1694 = vunpack.c.l.b16 %v1679
      %v1695 = vunpack.c.l.b16 %v1680
      %v1696 = vpack.c.b16 %v1693, %v1692
      %v1697 = vpack.c.b16 %v1695, %v1694
      %1700 = vmatprep.subr.bf16.mxu0 0
      %1701 = vmatpush1.bf16.msra.mxu0 0
      %1702 = vmatprep.subr.bf16.mxu0 0
      %1703 = vmatpush1.bf16.msra.mxu0 0
      %1704 = vmatprep.subr.bf16.mxu0 0
      %1705 = vmatpush1.bf16.msra.mxu0 0
      %1706 = vmatprep.subr.bf16.mxu0 0
      %1707 = vmatpush1.bf16.msra.mxu0 0
      %1708 = vmatprep.subr.bf16.mxu0 0
      %1709 = vmatpush1.bf16.msra.mxu0 0
      %1710 = vmatprep.subr.bf16.mxu0 0
      %1711 = vmatpush1.bf16.msra.mxu0 0
      %1712 = vmatprep.subr.bf16.mxu0 0
      %1713 = vmatpush1.bf16.msra.mxu0 %v1697
      %1714 = vmatprep.subr.bf16.mxu0 0
      %1715 = vmatpush1.bf16.msra.mxu0 %v1696
      %1716 = vmatprep.subr.bf16.mxu0 0
      %1717 = vmatpush2.bf16.msra.mxu0 0
      %1718 = vmatprep.subr.bf16.mxu0 0
      %1719 = vmatpush2.bf16.msra.mxu0 0
      %1720 = vmatprep.subr.bf16.mxu0 0
      %1721 = vmatpush2.bf16.msra.mxu0 0
      %1722 = vmatprep.subr.bf16.mxu0 0
      %1723 = vmatpush2.bf16.msra.mxu0 0
      %1724 = vmatprep.subr.bf16.mxu0 0
      %1725 = vmatpush2.bf16.msra.mxu0 0
      %1726 = vmatprep.subr.bf16.mxu0 0
      %1727 = vmatpush2.bf16.msra.mxu0 0
      %1728 = vmatprep.subr.bf16.mxu0 0
      %1729 = vmatpush2.bf16.msra.mxu0 0
      %1730 = vmatprep.subr.bf16.mxu0 0
      %1731 = vmatpush2.bf16.msra.mxu0 0
      %1732 = vmatprep.mubr.bf16.mxu0 0
      %1733 = vmatmul.mubr.bf16.gmra.mxu0 %v1635
      %v1734 = vpop.f32.mrf.mxu0
      %v1735 = vadd.f32 %v1686, %v1734
      %v1736 = vpop.f32.mrf.mxu0
      %v1737 = vpop.f32.mrf.mxu0
      %v1738 = vpop.f32.mrf.mxu0
      %1739 = vdwg.mxu0
      %v1740 = vsub.f32 0.0, %v1672
      %v1741 = vmul.f32 %v1740, 1.442695
      %v1742 = vpow.pop %v1741
      %v1743 = vadd.f32 %v1742, 1.0
      %v1744 = vrcp.pop %v1743
      %v1745 = vmul.f32 1.0, %v1744
      %v1746 = vmul.f32 %v1672, %v1745
      %v1747 = vmul.f32 %v1746, %v1735
      %v1748 = vpack.c.bf16 %v1747, %v1747
      %v1749 = vld [vmem:[%s13] sm:$0xf]
      %v1750 = vld [vmem:[%s13 + $0x4] sm:$0xf]
      %v1751 = vld [vmem:[%s13 + $0x8] sm:$0xf]
      %v1752 = vld [vmem:[%s13 + $0xc] sm:$0xf]
      %v1753 = vld [vmem:[%s13 + $0x10] sm:$0xf]
      %v1754 = vld [vmem:[%s13 + $0x14] sm:$0xf]
      %v1755 = vld [vmem:[%s13 + $0x18] sm:$0xf]
      %v1756 = vld [vmem:[%s13 + $0x1c] sm:$0xf]
      %v1757 = vld [vmem:[%s13 + $0x20] sm:$0xf]
      %v1758 = vld [vmem:[%s13 + $0x24] sm:$0xf]
      %v1759 = vld [vmem:[%s13 + $0x28] sm:$0xf]
      %v1760 = vld [vmem:[%s13 + $0x2c] sm:$0xf]
      %v1761 = vld [vmem:[%s13 + $0x30] sm:$0xf]
      %v1762 = vld [vmem:[%s13 + $0x34] sm:$0xf]
      %v1763 = vld [vmem:[%s13 + $0x38] sm:$0xf]
      %v1764 = vld [vmem:[%s13 + $0x3c] sm:$0xf]
      %v1765 = vld [vmem:[%s14] sm:$0x1]
      %v1767 = vlaneseq
      %v1768 = vshrl.u32 %v1767, 7
      %v1769 = vsub.s32 0, %v1768
      %v1770 = vrot.slane %v1765, %v1769
      %v1788 = vunpack.c.l.b16 %v1749
      %v1789 = vunpack.c.l.b16 %v1750
      %v1790 = vunpack.c.l.b16 %v1751
      %v1791 = vunpack.c.l.b16 %v1752
      %v1792 = vunpack.c.l.b16 %v1753
      %v1793 = vunpack.c.l.b16 %v1754
      %v1794 = vunpack.c.l.b16 %v1755
      %v1795 = vunpack.c.l.b16 %v1756
      %v1796 = vunpack.c.l.b16 %v1757
      %v1797 = vunpack.c.l.b16 %v1758
      %v1798 = vunpack.c.l.b16 %v1759
      %v1799 = vunpack.c.l.b16 %v1760
      %v1800 = vunpack.c.l.b16 %v1761
      %v1801 = vunpack.c.l.b16 %v1762
      %v1802 = vunpack.c.l.b16 %v1763
      %v1803 = vunpack.c.l.b16 %v1764
      %v1804 = vpack.c.b16 %v1789, %v1788
      %v1805 = vpack.c.b16 %v1791, %v1790
      %v1806 = vpack.c.b16 %v1793, %v1792
      %v1807 = vpack.c.b16 %v1795, %v1794
      %v1808 = vpack.c.b16 %v1797, %v1796
      %v1809 = vpack.c.b16 %v1799, %v1798
      %v1810 = vpack.c.b16 %v1801, %v1800
      %v1811 = vpack.c.b16 %v1803, %v1802
      %1820 = vmatprep.subr.bf16.mxu0 0
      %1821 = vmatpush1.bf16.msra.mxu0 %v1811
      %1822 = vmatprep.subr.bf16.mxu0 0
      %1823 = vmatpush1.bf16.msra.mxu0 %v1810
      %1824 = vmatprep.subr.bf16.mxu0 0
      %1825 = vmatpush1.bf16.msra.mxu0 %v1809
      %1826 = vmatprep.subr.bf16.mxu0 0
      %1827 = vmatpush1.bf16.msra.mxu0 %v1808
      %1828 = vmatprep.subr.bf16.mxu0 0
      %1829 = vmatpush1.bf16.msra.mxu0 %v1807
      %1830 = vmatprep.subr.bf16.mxu0 0
      %1831 = vmatpush1.bf16.msra.mxu0 %v1806
      %1832 = vmatprep.subr.bf16.mxu0 0
      %1833 = vmatpush1.bf16.msra.mxu0 %v1805
      %1834 = vmatprep.subr.bf16.mxu0 0
      %1835 = vmatpush1.bf16.msra.mxu0 %v1804
      %1836 = vmatprep.subr.bf16.mxu0 0
      %1837 = vmatpush2.bf16.msra.mxu0 0
      %1838 = vmatprep.subr.bf16.mxu0 0
      %1839 = vmatpush2.bf16.msra.mxu0 0
      %1840 = vmatprep.subr.bf16.mxu0 0
      %1841 = vmatpush2.bf16.msra.mxu0 0
      %1842 = vmatprep.subr.bf16.mxu0 0
      %1843 = vmatpush2.bf16.msra.mxu0 0
      %1844 = vmatprep.subr.bf16.mxu0 0
      %1845 = vmatpush2.bf16.msra.mxu0 0
      %1846 = vmatprep.subr.bf16.mxu0 0
      %1847 = vmatpush2.bf16.msra.mxu0 0
      %1848 = vmatprep.subr.bf16.mxu0 0
      %1849 = vmatpush2.bf16.msra.mxu0 0
      %1850 = vmatprep.subr.bf16.mxu0 0
      %1851 = vmatpush2.bf16.msra.mxu0 0
      %1852 = vmatprep.mubr.bf16.mxu0 0
      %1853 = vmatmul.mubr.bf16.gmra.mxu0 %v1748
      %v1854 = vpop.f32.mrf.mxu0
      %v1855 = vadd.f32 %v1770, %v1854
      %v1856 = vpop.f32.mrf.mxu0
      %v1857 = vpop.f32.mrf.mxu0
      %v1858 = vpop.f32.mrf.mxu0
      %1859 = vdwg.mxu0
      %v1860 = vadd.f32 %v1593, %v1855
      %1861 = vst.msk [vmem:[%s489] sm:$0xff] %vm494, %v1860
      %p1862 = scmp.lt.s32.totalorder %s26, 1
      %s1863 = scalar_select %p1862, %s26, 1
      %s1864 = smul.addr %s1863, 8
      %s1865 = scalar_lea.vmem %s15, %s1864
      // Predicated region
      $region81: #{llm_forward.3} parent=79 // pred_check
        %p1866 = pneg %p364
      $region82: #{llm_forward.3} parent=79 // pred_check_branch
        %1868 = sbr.rel (%p1866) target = $region84
      $region83: #{llm_forward.3} parent=79 // pred_region
        _
      $region84: #{llm_forward.3} parent=79 // pred_fallthru
        _
    $region80: #{llm_forward.3} parent=5 // pred_fallthru
      _
    %p1869 = scmp.le.s32.totalorder 2, %s21
    // Predicated region
    $region85: #{llm_forward.3} parent=5 // pred_check
      %p1870 = pneg %p1869
    $region86: #{llm_forward.3} parent=5 // pred_check_branch
      %1872 = sbr.rel (%p1870) target = $region88
    $region87: #{llm_forward.3} parent=5 // pred_region
      %s1873 = ssub.s32 %s21, 2
      // Predicated region
      $region89: #{llm_forward.3} parent=87 // pred_check
        %p1874 = pneg %p370
      $region90: #{llm_forward.3} parent=87 // pred_check_branch
        %1876 = sbr.rel (%p1874) target = $region92
      $region91: #{llm_forward.3} parent=87 // pred_region
        %p1877 = scmp.lt.s32.totalorder %s27, 1
        %s1878 = scalar_select %p1877, %s27, 1
        %s1879 = smul.addr %s1878, 8
        %s1880 = scalar_lea.vmem %s15, %s1879
      $region92: #{llm_forward.3} parent=87 // pred_fallthru
        _
    $region88: #{llm_forward.3} parent=5 // pred_fallthru
      _
  $region6: #{llm_forward.3} parent=0 // loop_footer
    %s25 = sadd.s32 1, %s21
  $region7: #{llm_forward.3} parent=0 // loop_footer_branch
    %20 = sbr.rel target = $region3
  $region8: #{llm_forward.3} parent=0 // loop_exit
    _

</llo_original>
